<compile_context>
chip_gen: v5e
topology: v5e:2x2
jax: 0.10.0
libtpu: 0.0.40
codegen_flags: <defaults>
</compile_context>

<pallas_src>
import jax
import jax.numpy as jnp
from jax import lax
from jax.experimental import pallas as pl
from jax.experimental.pallas import tpu as pltpu


def _round_up(x, m):
    return ((x + m - 1) // m) * m


def decoder_lstm_kernel(x_ref, wih_ref, whh_ref, b_ref, wfc_ref, bfc_ref,
                        y_ref, xg_sc, hall_sc):
    """Whole-sequence LSTM + fused fc projection, single grid point.

    x_ref:   (T, Bp, E)     merged inputs, time-major, batch padded to 8
    wih_ref: (E, 4*Hp)      input->gate weights (transposed, gate-padded)
    whh_ref: (Hp, 4*Hp)     hidden->gate weights (transposed, gate-padded)
    b_ref:   (1, 4*Hp)      b_ih + b_hh (gate-padded)
    wfc_ref: (Hp, V)        fc weight (transposed, row-padded)
    bfc_ref: (1, V)         fc bias
    y_ref:   (T, Bp, V)     logits, time-major
    xg_sc:   (T, Bp, 4*Hp)  VMEM scratch: precomputed input projections
    hall_sc: (T, Bp, Hp)    VMEM scratch: hidden states for all steps
    """
    T, Bp, E = x_ref.shape
    Hp = whh_ref.shape[0]
    G = 4 * Hp
    V = wfc_ref.shape[1]

    # ---- Phase 1: batched input projection (independent of the recurrence) ----
    x2d = x_ref[...].reshape(T * Bp, E)
    xg = jnp.dot(x2d, wih_ref[...], preferred_element_type=jnp.float32) + b_ref[...]
    xg_sc[...] = xg.reshape(T, Bp, G)

    # ---- Phase 2: serial recurrence; (h, c) carried as loop values ----
    def step(t, carry):
        h_prev, c_prev = carry
        gates = xg_sc[t] + jnp.dot(h_prev, whh_ref[...],
                                   preferred_element_type=jnp.float32)  # (Bp, 4Hp)
        # PyTorch LSTM gate order: i, f, g, o. Hp % 128 == 0 -> each slice is
        # whole, lane-aligned vregs (no relayout work on the critical path).
        i_g = jax.nn.sigmoid(gates[:, 0 * Hp:1 * Hp])
        f_g = jax.nn.sigmoid(gates[:, 1 * Hp:2 * Hp])
        g_g = jnp.tanh(gates[:, 2 * Hp:3 * Hp])
        o_g = jax.nn.sigmoid(gates[:, 3 * Hp:4 * Hp])
        c_new = f_g * c_prev + i_g * g_g
        h_new = o_g * jnp.tanh(c_new)
        hall_sc[t] = h_new
        return (h_new, c_new)

    h0 = jnp.zeros((Bp, Hp), jnp.float32)
    c0 = jnp.zeros((Bp, Hp), jnp.float32)
    lax.fori_loop(0, T, step, (h0, c0), unroll=True)

    # ---- Phase 3: one batched fc matmul over all (t, b) rows ----
    h2d = hall_sc[...].reshape(T * Bp, Hp)
    y2d = jnp.dot(h2d, wfc_ref[...], preferred_element_type=jnp.float32) + bfc_ref[...]
    y_ref[...] = y2d.reshape(T, Bp, V).astype(y_ref.dtype)


@jax.jit
def decoder_rnn_forward(features, captions, params):
    """Equivalent of DecoderRNN.forward(features, captions).

    features: (B, E) float32
    captions: (B, T) int32
    returns:  (B, T, V) float32
    """
    embed_w = params["embed_w"]            # (V, E)
    w_ih = params["w_ih"]                  # (4H, E)
    w_hh = params["w_hh"]                  # (4H, H)
    b_ih = params["b_ih"]                  # (4H,)
    b_hh = params["b_hh"]                  # (4H,)
    fc_w = params["fc_w"]                  # (V, H)
    fc_b = params["fc_b"]                  # (V,)

    B, E = features.shape
    T = captions.shape[1]
    H = w_hh.shape[1]
    V = fc_w.shape[0]

    # Pad batch to the f32 sublane count and hidden size to the lane count.
    Bp = _round_up(B, 8)
    Hp = _round_up(H, 128)
    G = 4 * Hp

    # --- XLA glue: embedding gather + merge + time-major layout + padding ---
    embeds = jnp.take(embed_w, captions, axis=0)                              # (B, T, E)
    merged = jnp.concatenate([features[:, None, :], embeds[:, :-1, :]], axis=1)
    x = jnp.transpose(merged, (1, 0, 2))                                      # (T, B, E)
    x = jnp.pad(x, ((0, 0), (0, Bp - B), (0, 0)))                             # (T, Bp, E)

    def pad_gates(w, pad_cols=0):
        # (4H, X) -> (4Hp, X [+ pad_cols]), padding each gate block separately
        # so the (i, f, g, o) ordering is preserved at the new stride Hp.
        w = w.reshape(4, H, -1)
        w = jnp.pad(w, ((0, 0), (0, Hp - H), (0, 0)))
        w = w.reshape(4 * Hp, -1)
        if pad_cols:
            w = jnp.pad(w, ((0, 0), (0, pad_cols)))
        return w

    wih_t = pad_gates(w_ih).T                                 # (E, 4Hp)
    whh_t = pad_gates(w_hh, pad_cols=Hp - H).T                # (Hp, 4Hp)
    b = pad_gates((b_ih + b_hh)[:, None])[:, 0][None, :]      # (1, 4Hp)
    wfc_t = jnp.pad(fc_w, ((0, 0), (0, Hp - H))).T            # (Hp, V)
    bfc = fc_b[None, :]                                       # (1, V)

    grid_spec = pltpu.PrefetchScalarGridSpec(
        num_scalar_prefetch=0,
        grid=(1,),                                     # whole sequence in one step
        in_specs=[
            pl.BlockSpec((T, Bp, E), lambda i: (0, 0, 0)),   # merged inputs
            pl.BlockSpec((E, G), lambda i: (0, 0)),          # W_ih^T
            pl.BlockSpec((Hp, G), lambda i: (0, 0)),         # W_hh^T
            pl.BlockSpec((1, G), lambda i: (0, 0)),          # combined bias
            pl.BlockSpec((Hp, V), lambda i: (0, 0)),         # fc weight^T
            pl.BlockSpec((1, V), lambda i: (0, 0)),          # fc bias
        ],
        out_specs=pl.BlockSpec((T, Bp, V), lambda i: (0, 0, 0)),
        scratch_shapes=[
            pltpu.VMEM((T, Bp, G), jnp.float32),   # precomputed input projections
            pltpu.VMEM((T, Bp, Hp), jnp.float32),  # hidden states for all steps
        ],
    )

    y_tmaj = pl.pallas_call(
        decoder_lstm_kernel,
        out_shape=jax.ShapeDtypeStruct((T, Bp, V), jnp.float32),
        grid_spec=grid_spec,
        compiler_params=pltpu.CompilerParams(
            dimension_semantics=("arbitrary",)),       # serial recurrence inside
    )(x, wih_t, whh_t, b, wfc_t, bfc)

    # (T, Bp, V) -> (B, T, V) batch_first; drop batch padding rows.
    return jnp.transpose(y_tmaj, (1, 0, 2))[:B]


def init_params(key, embed_size, hidden_size, vocab_size):
    """Deterministic parameter init mirroring DecoderRNN.__init__/init_weights."""
    k_embed, k_fcw, k_wih, k_whh, k_bih, k_bhh = jax.random.split(key, 6)
    bound = 1.0 / jnp.sqrt(hidden_size)            # torch default LSTM init range
    return {
        "embed_w": jax.random.uniform(k_embed, (vocab_size, embed_size),
                                      minval=-1.0, maxval=1.0, dtype=jnp.float32),
        "fc_w": jax.random.uniform(k_fcw, (vocab_size, hidden_size),
                                   minval=-1.0, maxval=1.0, dtype=jnp.float32),
        "fc_b": jnp.zeros((vocab_size,), jnp.float32),
        "w_ih": jax.random.uniform(k_wih, (4 * hidden_size, embed_size),
                                   minval=-bound, maxval=bound, dtype=jnp.float32),
        "w_hh": jax.random.uniform(k_whh, (4 * hidden_size, hidden_size),
                                   minval=-bound, maxval=bound, dtype=jnp.float32),
        "b_ih": jax.random.uniform(k_bih, (4 * hidden_size,),
                                   minval=-bound, maxval=bound, dtype=jnp.float32),
        "b_hh": jax.random.uniform(k_bhh, (4 * hidden_size,),
                                   minval=-bound, maxval=bound, dtype=jnp.float32),
    }


def decoder_rnn_reference(features, captions, params):
    """Pure-JAX reference (lax.scan LSTM) for correctness checking."""
    embed_w = params["embed_w"]
    embeds = jnp.take(embed_w, captions, axis=0)
    merged = jnp.concatenate([features[:, None, :], embeds[:, :-1, :]], axis=1)
    x = jnp.transpose(merged, (1, 0, 2))           # (T, B, E)

    H = params["w_hh"].shape[1]
    wih_t = params["w_ih"].T
    whh_t = params["w_hh"].T
    b = params["b_ih"] + params["b_hh"]

    def step(carry, x_t):
        h, c = carry
        gates = x_t @ wih_t + h @ whh_t + b
        i = jax.nn.sigmoid(gates[:, 0 * H:1 * H])
        f = jax.nn.sigmoid(gates[:, 1 * H:2 * H])
        g = jnp.tanh(gates[:, 2 * H:3 * H])
        o = jax.nn.sigmoid(gates[:, 3 * H:4 * H])
        c = f * c + i * g
        h = o * jnp.tanh(c)
        return (h, c), h

    B = features.shape[0]
    h0 = jnp.zeros((B, H), jnp.float32)
    c0 = jnp.zeros((B, H), jnp.float32)
    _, hs = lax.scan(step, (h0, c0), x)            # (T, B, H)
    hiddens = jnp.transpose(hs, (1, 0, 2))         # (B, T, H)
    return hiddens @ params["fc_w"].T + params["fc_b"]


if __name__ == "__main__":
    # Small shapes consistent with the module's forward pass.
    embed_size, hidden_size, vocab_size = 32, 32, 128
    B, T = 2, 8

    key = jax.random.PRNGKey(0)
    k_params, k_feat, k_cap = jax.random.split(key, 3)

    params = init_params(k_params, embed_size, hidden_size, vocab_size)
    features = jax.random.normal(k_feat, (B, embed_size), dtype=jnp.float32)
    captions = jax.random.randint(k_cap, (B, T), 0, vocab_size, dtype=jnp.int32)

    out = decoder_rnn_forward(features, captions, params)
    out = jax.block_until_ready(out)

    ref = decoder_rnn_reference(features, captions, params)
    assert out.shape == (B, T, vocab_size), out.shape
    assert jnp.allclose(out, ref, atol=1e-3, rtol=1e-3), "mismatch vs reference"

    print("KERNEL_OK")
</pallas_src>

<mosaic_0001>
module attributes {stable_mosaic.version = 11 : i64} {
  func.func @decoder_lstm_kernel(%arg0: i32, %arg1: memref<8x8x32xf32, #tpu.memory_space<vmem>>, %arg2: memref<32x512xf32, #tpu.memory_space<vmem>>, %arg3: memref<128x512xf32, #tpu.memory_space<vmem>>, %arg4: memref<1x512xf32, #tpu.memory_space<vmem>>, %arg5: memref<128x128xf32, #tpu.memory_space<vmem>>, %arg6: memref<1x128xf32, #tpu.memory_space<vmem>>, %arg7: memref<8x8x128xf32, #tpu.memory_space<vmem>>, %arg8: memref<8x8x512xf32, #tpu.memory_space<vmem>>, %arg9: memref<8x8x128xf32, #tpu.memory_space<vmem>>) attributes {dimension_semantics = [#tpu.dimension_semantics<arbitrary>], iteration_bounds = array<i64: 1>, scalar_prefetch = 0 : i64, scratch_operands = 2 : i64, tpu.core_type = #tpu.core_type<tc>, window_params = [{pipeline_mode = #tpu.pipeline_mode<synchronous>, transform_indices = @transform_0, window_bounds = array<i64: 8, 8, 32>}, {pipeline_mode = #tpu.pipeline_mode<synchronous>, transform_indices = @transform_1, window_bounds = array<i64: 32, 512>}, {pipeline_mode = #tpu.pipeline_mode<synchronous>, transform_indices = @transform_2, window_bounds = array<i64: 128, 512>}, {pipeline_mode = #tpu.pipeline_mode<synchronous>, transform_indices = @transform_3, window_bounds = array<i64: 1, 512>}, {pipeline_mode = #tpu.pipeline_mode<synchronous>, transform_indices = @transform_4, window_bounds = array<i64: 128, 128>}, {pipeline_mode = #tpu.pipeline_mode<synchronous>, transform_indices = @transform_5, window_bounds = array<i64: 1, 128>}, {pipeline_mode = #tpu.pipeline_mode<synchronous>, transform_indices = @transform_6, window_bounds = array<i64: 8, 8, 128>}]} {
    %c0 = arith.constant 0 : index
    %c0_0 = arith.constant 0 : index
    %c0_1 = arith.constant 0 : index
    %0 = vector.load %arg1[%c0, %c0_0, %c0_1] : memref<8x8x32xf32, #tpu.memory_space<vmem>>, vector<8x8x32xf32>
    %1 = vector.shape_cast %0 : vector<8x8x32xf32> to vector<64x32xf32>
    %c0_2 = arith.constant 0 : index
    %c0_3 = arith.constant 0 : index
    %2 = vector.load %arg2[%c0_2, %c0_3] : memref<32x512xf32, #tpu.memory_space<vmem>>, vector<32x512xf32>
    %cst = arith.constant dense<0.000000e+00> : vector<64x512xf32>
    %3 = tpu.matmul %1, %2, %cst {dimension_numbers = #tpu.dot_dimension_numbers<[1], [0], [0], [1], [0, 0, 1, 1], [], []>} : vector<64x32xf32>, vector<32x512xf32>, vector<64x512xf32> -> vector<64x512xf32>
    %c0_4 = arith.constant 0 : index
    %c0_5 = arith.constant 0 : index
    %4 = vector.load %arg4[%c0_4, %c0_5] : memref<1x512xf32, #tpu.memory_space<vmem>>, vector<1x512xf32>
    %5 = vector.broadcast %4 : vector<1x512xf32> to vector<64x512xf32>
    %6 = arith.addf %3, %5 : vector<64x512xf32>
    %7 = vector.shape_cast %6 : vector<64x512xf32> to vector<8x8x512xf32>
    %c0_6 = arith.constant 0 : index
    %c0_7 = arith.constant 0 : index
    %c0_8 = arith.constant 0 : index
    %8 = vector.load %arg8[%c0_6, %c0_7, %c0_8] : memref<8x8x512xf32, #tpu.memory_space<vmem>>, vector<8x8x512xf32>
    tpu.vector_store %arg8[%c0_6, %c0_7, %c0_8], %7 {strides = array<i32>} : memref<8x8x512xf32, #tpu.memory_space<vmem>>, vector<8x8x512xf32>,
    %cst_9 = arith.constant 0.000000e+00 : f32
    %9 = vector.broadcast %cst_9 : f32 to vector<8x128xf32>
    %cst_10 = arith.constant 0.000000e+00 : f32
    %10 = vector.broadcast %cst_10 : f32 to vector<8x128xf32>
    %c0_i32 = arith.constant 0 : i32
    %11 = arith.index_cast %c0_i32 : i32 to index
    %c0_11 = arith.constant 0 : index
    %c0_12 = arith.constant 0 : index
    %12 = vector.load %arg8[%11, %c0_11, %c0_12] : memref<8x8x512xf32, #tpu.memory_space<vmem>>, vector<1x8x512xf32>
    %13 = vector.shape_cast %12 : vector<1x8x512xf32> to vector<8x512xf32>
    %c0_13 = arith.constant 0 : index
    %c0_14 = arith.constant 0 : index
    %14 = vector.load %arg3[%c0_13, %c0_14] : memref<128x512xf32, #tpu.memory_space<vmem>>, vector<128x512xf32>
    %cst_15 = arith.constant dense<0.000000e+00> : vector<8x512xf32>
    %15 = tpu.matmul %9, %14, %cst_15 {dimension_numbers = #tpu.dot_dimension_numbers<[1], [0], [0], [1], [0, 0, 1, 1], [], []>} : vector<8x128xf32>, vector<128x512xf32>, vector<8x512xf32> -> vector<8x512xf32>
    %16 = arith.addf %13, %15 : vector<8x512xf32>
    %17 = vector.extract_strided_slice %16 {offsets = [0, 0], sizes = [8, 128], strides = [1, 1]} : vector<8x512xf32> to vector<8x128xf32>
    %18 = arith.negf %17 : vector<8x128xf32>
    %19 = math.exp %18 : vector<8x128xf32>
    %cst_16 = arith.constant 1.000000e+00 : f32
    %20 = vector.broadcast %cst_16 : f32 to vector<8x128xf32>
    %21 = arith.addf %20, %19 : vector<8x128xf32>
    %22 = arith.divf %20, %21 : vector<8x128xf32>
    %23 = vector.extract_strided_slice %16 {offsets = [0, 128], sizes = [8, 128], strides = [1, 1]} : vector<8x512xf32> to vector<8x128xf32>
    %24 = arith.negf %23 : vector<8x128xf32>
    %25 = math.exp %24 : vector<8x128xf32>
    %cst_17 = arith.constant 1.000000e+00 : f32
    %26 = vector.broadcast %cst_17 : f32 to vector<8x128xf32>
    %27 = arith.addf %26, %25 : vector<8x128xf32>
    %28 = arith.divf %26, %27 : vector<8x128xf32>
    %29 = vector.extract_strided_slice %16 {offsets = [0, 256], sizes = [8, 128], strides = [1, 1]} : vector<8x512xf32> to vector<8x128xf32>
    %30 = math.tanh %29 : vector<8x128xf32>
    %31 = vector.extract_strided_slice %16 {offsets = [0, 384], sizes = [8, 128], strides = [1, 1]} : vector<8x512xf32> to vector<8x128xf32>
    %32 = arith.negf %31 : vector<8x128xf32>
    %33 = math.exp %32 : vector<8x128xf32>
    %cst_18 = arith.constant 1.000000e+00 : f32
    %34 = vector.broadcast %cst_18 : f32 to vector<8x128xf32>
    %35 = arith.addf %34, %33 : vector<8x128xf32>
    %36 = arith.divf %34, %35 : vector<8x128xf32>
    %37 = arith.mulf %28, %10 : vector<8x128xf32>
    %38 = arith.mulf %22, %30 : vector<8x128xf32>
    %39 = arith.addf %37, %38 : vector<8x128xf32>
    %40 = math.tanh %39 : vector<8x128xf32>
    %41 = arith.mulf %36, %40 : vector<8x128xf32>
    %42 = arith.index_cast %c0_i32 : i32 to index
    %c0_19 = arith.constant 0 : index
    %c0_20 = arith.constant 0 : index
    %43 = vector.load %arg9[%42, %c0_19, %c0_20] : memref<8x8x128xf32, #tpu.memory_space<vmem>>, vector<1x8x128xf32>
    %44 = vector.shape_cast %43 : vector<1x8x128xf32> to vector<8x128xf32>
    %45 = vector.shape_cast %41 : vector<8x128xf32> to vector<1x8x128xf32>
    tpu.vector_store %arg9[%42, %c0_19, %c0_20], %45 {strides = array<i32>} : memref<8x8x128xf32, #tpu.memory_space<vmem>>, vector<1x8x128xf32>,
    %c1_i32 = arith.constant 1 : i32
    %46 = arith.index_cast %c1_i32 : i32 to index
    %c0_21 = arith.constant 0 : index
    %c0_22 = arith.constant 0 : index
    %47 = vector.load %arg8[%46, %c0_21, %c0_22] : memref<8x8x512xf32, #tpu.memory_space<vmem>>, vector<1x8x512xf32>
    %48 = vector.shape_cast %47 : vector<1x8x512xf32> to vector<8x512xf32>
    %c0_23 = arith.constant 0 : index
    %c0_24 = arith.constant 0 : index
    %49 = vector.load %arg3[%c0_23, %c0_24] : memref<128x512xf32, #tpu.memory_space<vmem>>, vector<128x512xf32>
    %cst_25 = arith.constant dense<0.000000e+00> : vector<8x512xf32>
    %50 = tpu.matmul %41, %49, %cst_25 {dimension_numbers = #tpu.dot_dimension_numbers<[1], [0], [0], [1], [0, 0, 1, 1], [], []>} : vector<8x128xf32>, vector<128x512xf32>, vector<8x512xf32> -> vector<8x512xf32>
    %51 = arith.addf %48, %50 : vector<8x512xf32>
    %52 = vector.extract_strided_slice %51 {offsets = [0, 0], sizes = [8, 128], strides = [1, 1]} : vector<8x512xf32> to vector<8x128xf32>
    %53 = arith.negf %52 : vector<8x128xf32>
    %54 = math.exp %53 : vector<8x128xf32>
    %cst_26 = arith.constant 1.000000e+00 : f32
    %55 = vector.broadcast %cst_26 : f32 to vector<8x128xf32>
    %56 = arith.addf %55, %54 : vector<8x128xf32>
    %57 = arith.divf %55, %56 : vector<8x128xf32>
    %58 = vector.extract_strided_slice %51 {offsets = [0, 128], sizes = [8, 128], strides = [1, 1]} : vector<8x512xf32> to vector<8x128xf32>
    %59 = arith.negf %58 : vector<8x128xf32>
    %60 = math.exp %59 : vector<8x128xf32>
    %cst_27 = arith.constant 1.000000e+00 : f32
    %61 = vector.broadcast %cst_27 : f32 to vector<8x128xf32>
    %62 = arith.addf %61, %60 : vector<8x128xf32>
    %63 = arith.divf %61, %62 : vector<8x128xf32>
    %64 = vector.extract_strided_slice %51 {offsets = [0, 256], sizes = [8, 128], strides = [1, 1]} : vector<8x512xf32> to vector<8x128xf32>
    %65 = math.tanh %64 : vector<8x128xf32>
    %66 = vector.extract_strided_slice %51 {offsets = [0, 384], sizes = [8, 128], strides = [1, 1]} : vector<8x512xf32> to vector<8x128xf32>
    %67 = arith.negf %66 : vector<8x128xf32>
    %68 = math.exp %67 : vector<8x128xf32>
    %cst_28 = arith.constant 1.000000e+00 : f32
    %69 = vector.broadcast %cst_28 : f32 to vector<8x128xf32>
    %70 = arith.addf %69, %68 : vector<8x128xf32>
    %71 = arith.divf %69, %70 : vector<8x128xf32>
    %72 = arith.mulf %63, %39 : vector<8x128xf32>
    %73 = arith.mulf %57, %65 : vector<8x128xf32>
    %74 = arith.addf %72, %73 : vector<8x128xf32>
    %75 = math.tanh %74 : vector<8x128xf32>
    %76 = arith.mulf %71, %75 : vector<8x128xf32>
    %77 = arith.index_cast %c1_i32 : i32 to index
    %c0_29 = arith.constant 0 : index
    %c0_30 = arith.constant 0 : index
    %78 = vector.load %arg9[%77, %c0_29, %c0_30] : memref<8x8x128xf32, #tpu.memory_space<vmem>>, vector<1x8x128xf32>
    %79 = vector.shape_cast %78 : vector<1x8x128xf32> to vector<8x128xf32>
    %80 = vector.shape_cast %76 : vector<8x128xf32> to vector<1x8x128xf32>
    tpu.vector_store %arg9[%77, %c0_29, %c0_30], %80 {strides = array<i32>} : memref<8x8x128xf32, #tpu.memory_space<vmem>>, vector<1x8x128xf32>,
    %c2_i32 = arith.constant 2 : i32
    %81 = arith.index_cast %c2_i32 : i32 to index
    %c0_31 = arith.constant 0 : index
    %c0_32 = arith.constant 0 : index
    %82 = vector.load %arg8[%81, %c0_31, %c0_32] : memref<8x8x512xf32, #tpu.memory_space<vmem>>, vector<1x8x512xf32>
    %83 = vector.shape_cast %82 : vector<1x8x512xf32> to vector<8x512xf32>
    %c0_33 = arith.constant 0 : index
    %c0_34 = arith.constant 0 : index
    %84 = vector.load %arg3[%c0_33, %c0_34] : memref<128x512xf32, #tpu.memory_space<vmem>>, vector<128x512xf32>
    %cst_35 = arith.constant dense<0.000000e+00> : vector<8x512xf32>
    %85 = tpu.matmul %76, %84, %cst_35 {dimension_numbers = #tpu.dot_dimension_numbers<[1], [0], [0], [1], [0, 0, 1, 1], [], []>} : vector<8x128xf32>, vector<128x512xf32>, vector<8x512xf32> -> vector<8x512xf32>
    %86 = arith.addf %83, %85 : vector<8x512xf32>
    %87 = vector.extract_strided_slice %86 {offsets = [0, 0], sizes = [8, 128], strides = [1, 1]} : vector<8x512xf32> to vector<8x128xf32>
    %88 = arith.negf %87 : vector<8x128xf32>
    %89 = math.exp %88 : vector<8x128xf32>
    %cst_36 = arith.constant 1.000000e+00 : f32
    %90 = vector.broadcast %cst_36 : f32 to vector<8x128xf32>
    %91 = arith.addf %90, %89 : vector<8x128xf32>
    %92 = arith.divf %90, %91 : vector<8x128xf32>
    %93 = vector.extract_strided_slice %86 {offsets = [0, 128], sizes = [8, 128], strides = [1, 1]} : vector<8x512xf32> to vector<8x128xf32>
    %94 = arith.negf %93 : vector<8x128xf32>
    %95 = math.exp %94 : vector<8x128xf32>
    %cst_37 = arith.constant 1.000000e+00 : f32
    %96 = vector.broadcast %cst_37 : f32 to vector<8x128xf32>
    %97 = arith.addf %96, %95 : vector<8x128xf32>
    %98 = arith.divf %96, %97 : vector<8x128xf32>
    %99 = vector.extract_strided_slice %86 {offsets = [0, 256], sizes = [8, 128], strides = [1, 1]} : vector<8x512xf32> to vector<8x128xf32>
    %100 = math.tanh %99 : vector<8x128xf32>
    %101 = vector.extract_strided_slice %86 {offsets = [0, 384], sizes = [8, 128], strides = [1, 1]} : vector<8x512xf32> to vector<8x128xf32>
    %102 = arith.negf %101 : vector<8x128xf32>
    %103 = math.exp %102 : vector<8x128xf32>
    %cst_38 = arith.constant 1.000000e+00 : f32
    %104 = vector.broadcast %cst_38 : f32 to vector<8x128xf32>
    %105 = arith.addf %104, %103 : vector<8x128xf32>
    %106 = arith.divf %104, %105 : vector<8x128xf32>
    %107 = arith.mulf %98, %74 : vector<8x128xf32>
    %108 = arith.mulf %92, %100 : vector<8x128xf32>
    %109 = arith.addf %107, %108 : vector<8x128xf32>
    %110 = math.tanh %109 : vector<8x128xf32>
    %111 = arith.mulf %106, %110 : vector<8x128xf32>
    %112 = arith.index_cast %c2_i32 : i32 to index
    %c0_39 = arith.constant 0 : index
    %c0_40 = arith.constant 0 : index
    %113 = vector.load %arg9[%112, %c0_39, %c0_40] : memref<8x8x128xf32, #tpu.memory_space<vmem>>, vector<1x8x128xf32>
    %114 = vector.shape_cast %113 : vector<1x8x128xf32> to vector<8x128xf32>
    %115 = vector.shape_cast %111 : vector<8x128xf32> to vector<1x8x128xf32>
    tpu.vector_store %arg9[%112, %c0_39, %c0_40], %115 {strides = array<i32>} : memref<8x8x128xf32, #tpu.memory_space<vmem>>, vector<1x8x128xf32>,
    %c3_i32 = arith.constant 3 : i32
    %116 = arith.index_cast %c3_i32 : i32 to index
    %c0_41 = arith.constant 0 : index
    %c0_42 = arith.constant 0 : index
    %117 = vector.load %arg8[%116, %c0_41, %c0_42] : memref<8x8x512xf32, #tpu.memory_space<vmem>>, vector<1x8x512xf32>
    %118 = vector.shape_cast %117 : vector<1x8x512xf32> to vector<8x512xf32>
    %c0_43 = arith.constant 0 : index
    %c0_44 = arith.constant 0 : index
    %119 = vector.load %arg3[%c0_43, %c0_44] : memref<128x512xf32, #tpu.memory_space<vmem>>, vector<128x512xf32>
    %cst_45 = arith.constant dense<0.000000e+00> : vector<8x512xf32>
    %120 = tpu.matmul %111, %119, %cst_45 {dimension_numbers = #tpu.dot_dimension_numbers<[1], [0], [0], [1], [0, 0, 1, 1], [], []>} : vector<8x128xf32>, vector<128x512xf32>, vector<8x512xf32> -> vector<8x512xf32>
    %121 = arith.addf %118, %120 : vector<8x512xf32>
    %122 = vector.extract_strided_slice %121 {offsets = [0, 0], sizes = [8, 128], strides = [1, 1]} : vector<8x512xf32> to vector<8x128xf32>
    %123 = arith.negf %122 : vector<8x128xf32>
    %124 = math.exp %123 : vector<8x128xf32>
    %cst_46 = arith.constant 1.000000e+00 : f32
    %125 = vector.broadcast %cst_46 : f32 to vector<8x128xf32>
    %126 = arith.addf %125, %124 : vector<8x128xf32>
    %127 = arith.divf %125, %126 : vector<8x128xf32>
    %128 = vector.extract_strided_slice %121 {offsets = [0, 128], sizes = [8, 128], strides = [1, 1]} : vector<8x512xf32> to vector<8x128xf32>
    %129 = arith.negf %128 : vector<8x128xf32>
    %130 = math.exp %129 : vector<8x128xf32>
    %cst_47 = arith.constant 1.000000e+00 : f32
    %131 = vector.broadcast %cst_47 : f32 to vector<8x128xf32>
    %132 = arith.addf %131, %130 : vector<8x128xf32>
    %133 = arith.divf %131, %132 : vector<8x128xf32>
    %134 = vector.extract_strided_slice %121 {offsets = [0, 256], sizes = [8, 128], strides = [1, 1]} : vector<8x512xf32> to vector<8x128xf32>
    %135 = math.tanh %134 : vector<8x128xf32>
    %136 = vector.extract_strided_slice %121 {offsets = [0, 384], sizes = [8, 128], strides = [1, 1]} : vector<8x512xf32> to vector<8x128xf32>
    %137 = arith.negf %136 : vector<8x128xf32>
    %138 = math.exp %137 : vector<8x128xf32>
    %cst_48 = arith.constant 1.000000e+00 : f32
    %139 = vector.broadcast %cst_48 : f32 to vector<8x128xf32>
    %140 = arith.addf %139, %138 : vector<8x128xf32>
    %141 = arith.divf %139, %140 : vector<8x128xf32>
    %142 = arith.mulf %133, %109 : vector<8x128xf32>
    %143 = arith.mulf %127, %135 : vector<8x128xf32>
    %144 = arith.addf %142, %143 : vector<8x128xf32>
    %145 = math.tanh %144 : vector<8x128xf32>
    %146 = arith.mulf %141, %145 : vector<8x128xf32>
    %147 = arith.index_cast %c3_i32 : i32 to index
    %c0_49 = arith.constant 0 : index
    %c0_50 = arith.constant 0 : index
    %148 = vector.load %arg9[%147, %c0_49, %c0_50] : memref<8x8x128xf32, #tpu.memory_space<vmem>>, vector<1x8x128xf32>
    %149 = vector.shape_cast %148 : vector<1x8x128xf32> to vector<8x128xf32>
    %150 = vector.shape_cast %146 : vector<8x128xf32> to vector<1x8x128xf32>
    tpu.vector_store %arg9[%147, %c0_49, %c0_50], %150 {strides = array<i32>} : memref<8x8x128xf32, #tpu.memory_space<vmem>>, vector<1x8x128xf32>,
    %c4_i32 = arith.constant 4 : i32
    %151 = arith.index_cast %c4_i32 : i32 to index
    %c0_51 = arith.constant 0 : index
    %c0_52 = arith.constant 0 : index
    %152 = vector.load %arg8[%151, %c0_51, %c0_52] : memref<8x8x512xf32, #tpu.memory_space<vmem>>, vector<1x8x512xf32>
    %153 = vector.shape_cast %152 : vector<1x8x512xf32> to vector<8x512xf32>
    %c0_53 = arith.constant 0 : index
    %c0_54 = arith.constant 0 : index
    %154 = vector.load %arg3[%c0_53, %c0_54] : memref<128x512xf32, #tpu.memory_space<vmem>>, vector<128x512xf32>
    %cst_55 = arith.constant dense<0.000000e+00> : vector<8x512xf32>
    %155 = tpu.matmul %146, %154, %cst_55 {dimension_numbers = #tpu.dot_dimension_numbers<[1], [0], [0], [1], [0, 0, 1, 1], [], []>} : vector<8x128xf32>, vector<128x512xf32>, vector<8x512xf32> -> vector<8x512xf32>
    %156 = arith.addf %153, %155 : vector<8x512xf32>
    %157 = vector.extract_strided_slice %156 {offsets = [0, 0], sizes = [8, 128], strides = [1, 1]} : vector<8x512xf32> to vector<8x128xf32>
    %158 = arith.negf %157 : vector<8x128xf32>
    %159 = math.exp %158 : vector<8x128xf32>
    %cst_56 = arith.constant 1.000000e+00 : f32
    %160 = vector.broadcast %cst_56 : f32 to vector<8x128xf32>
    %161 = arith.addf %160, %159 : vector<8x128xf32>
    %162 = arith.divf %160, %161 : vector<8x128xf32>
    %163 = vector.extract_strided_slice %156 {offsets = [0, 128], sizes = [8, 128], strides = [1, 1]} : vector<8x512xf32> to vector<8x128xf32>
    %164 = arith.negf %163 : vector<8x128xf32>
    %165 = math.exp %164 : vector<8x128xf32>
    %cst_57 = arith.constant 1.000000e+00 : f32
    %166 = vector.broadcast %cst_57 : f32 to vector<8x128xf32>
    %167 = arith.addf %166, %165 : vector<8x128xf32>
    %168 = arith.divf %166, %167 : vector<8x128xf32>
    %169 = vector.extract_strided_slice %156 {offsets = [0, 256], sizes = [8, 128], strides = [1, 1]} : vector<8x512xf32> to vector<8x128xf32>
    %170 = math.tanh %169 : vector<8x128xf32>
    %171 = vector.extract_strided_slice %156 {offsets = [0, 384], sizes = [8, 128], strides = [1, 1]} : vector<8x512xf32> to vector<8x128xf32>
    %172 = arith.negf %171 : vector<8x128xf32>
    %173 = math.exp %172 : vector<8x128xf32>
    %cst_58 = arith.constant 1.000000e+00 : f32
    %174 = vector.broadcast %cst_58 : f32 to vector<8x128xf32>
    %175 = arith.addf %174, %173 : vector<8x128xf32>
    %176 = arith.divf %174, %175 : vector<8x128xf32>
    %177 = arith.mulf %168, %144 : vector<8x128xf32>
    %178 = arith.mulf %162, %170 : vector<8x128xf32>
    %179 = arith.addf %177, %178 : vector<8x128xf32>
    %180 = math.tanh %179 : vector<8x128xf32>
    %181 = arith.mulf %176, %180 : vector<8x128xf32>
    %182 = arith.index_cast %c4_i32 : i32 to index
    %c0_59 = arith.constant 0 : index
    %c0_60 = arith.constant 0 : index
    %183 = vector.load %arg9[%182, %c0_59, %c0_60] : memref<8x8x128xf32, #tpu.memory_space<vmem>>, vector<1x8x128xf32>
    %184 = vector.shape_cast %183 : vector<1x8x128xf32> to vector<8x128xf32>
    %185 = vector.shape_cast %181 : vector<8x128xf32> to vector<1x8x128xf32>
    tpu.vector_store %arg9[%182, %c0_59, %c0_60], %185 {strides = array<i32>} : memref<8x8x128xf32, #tpu.memory_space<vmem>>, vector<1x8x128xf32>,
    %c5_i32 = arith.constant 5 : i32
    %186 = arith.index_cast %c5_i32 : i32 to index
    %c0_61 = arith.constant 0 : index
    %c0_62 = arith.constant 0 : index
    %187 = vector.load %arg8[%186, %c0_61, %c0_62] : memref<8x8x512xf32, #tpu.memory_space<vmem>>, vector<1x8x512xf32>
    %188 = vector.shape_cast %187 : vector<1x8x512xf32> to vector<8x512xf32>
    %c0_63 = arith.constant 0 : index
    %c0_64 = arith.constant 0 : index
    %189 = vector.load %arg3[%c0_63, %c0_64] : memref<128x512xf32, #tpu.memory_space<vmem>>, vector<128x512xf32>
    %cst_65 = arith.constant dense<0.000000e+00> : vector<8x512xf32>
    %190 = tpu.matmul %181, %189, %cst_65 {dimension_numbers = #tpu.dot_dimension_numbers<[1], [0], [0], [1], [0, 0, 1, 1], [], []>} : vector<8x128xf32>, vector<128x512xf32>, vector<8x512xf32> -> vector<8x512xf32>
    %191 = arith.addf %188, %190 : vector<8x512xf32>
    %192 = vector.extract_strided_slice %191 {offsets = [0, 0], sizes = [8, 128], strides = [1, 1]} : vector<8x512xf32> to vector<8x128xf32>
    %193 = arith.negf %192 : vector<8x128xf32>
    %194 = math.exp %193 : vector<8x128xf32>
    %cst_66 = arith.constant 1.000000e+00 : f32
    %195 = vector.broadcast %cst_66 : f32 to vector<8x128xf32>
    %196 = arith.addf %195, %194 : vector<8x128xf32>
    %197 = arith.divf %195, %196 : vector<8x128xf32>
    %198 = vector.extract_strided_slice %191 {offsets = [0, 128], sizes = [8, 128], strides = [1, 1]} : vector<8x512xf32> to vector<8x128xf32>
    %199 = arith.negf %198 : vector<8x128xf32>
    %200 = math.exp %199 : vector<8x128xf32>
    %cst_67 = arith.constant 1.000000e+00 : f32
    %201 = vector.broadcast %cst_67 : f32 to vector<8x128xf32>
    %202 = arith.addf %201, %200 : vector<8x128xf32>
    %203 = arith.divf %201, %202 : vector<8x128xf32>
    %204 = vector.extract_strided_slice %191 {offsets = [0, 256], sizes = [8, 128], strides = [1, 1]} : vector<8x512xf32> to vector<8x128xf32>
    %205 = math.tanh %204 : vector<8x128xf32>
    %206 = vector.extract_strided_slice %191 {offsets = [0, 384], sizes = [8, 128], strides = [1, 1]} : vector<8x512xf32> to vector<8x128xf32>
    %207 = arith.negf %206 : vector<8x128xf32>
    %208 = math.exp %207 : vector<8x128xf32>
    %cst_68 = arith.constant 1.000000e+00 : f32
    %209 = vector.broadcast %cst_68 : f32 to vector<8x128xf32>
    %210 = arith.addf %209, %208 : vector<8x128xf32>
    %211 = arith.divf %209, %210 : vector<8x128xf32>
    %212 = arith.mulf %203, %179 : vector<8x128xf32>
    %213 = arith.mulf %197, %205 : vector<8x128xf32>
    %214 = arith.addf %212, %213 : vector<8x128xf32>
    %215 = math.tanh %214 : vector<8x128xf32>
    %216 = arith.mulf %211, %215 : vector<8x128xf32>
    %217 = arith.index_cast %c5_i32 : i32 to index
    %c0_69 = arith.constant 0 : index
    %c0_70 = arith.constant 0 : index
    %218 = vector.load %arg9[%217, %c0_69, %c0_70] : memref<8x8x128xf32, #tpu.memory_space<vmem>>, vector<1x8x128xf32>
    %219 = vector.shape_cast %218 : vector<1x8x128xf32> to vector<8x128xf32>
    %220 = vector.shape_cast %216 : vector<8x128xf32> to vector<1x8x128xf32>
    tpu.vector_store %arg9[%217, %c0_69, %c0_70], %220 {strides = array<i32>} : memref<8x8x128xf32, #tpu.memory_space<vmem>>, vector<1x8x128xf32>,
    %c6_i32 = arith.constant 6 : i32
    %221 = arith.index_cast %c6_i32 : i32 to index
    %c0_71 = arith.constant 0 : index
    %c0_72 = arith.constant 0 : index
    %222 = vector.load %arg8[%221, %c0_71, %c0_72] : memref<8x8x512xf32, #tpu.memory_space<vmem>>, vector<1x8x512xf32>
    %223 = vector.shape_cast %222 : vector<1x8x512xf32> to vector<8x512xf32>
    %c0_73 = arith.constant 0 : index
    %c0_74 = arith.constant 0 : index
    %224 = vector.load %arg3[%c0_73, %c0_74] : memref<128x512xf32, #tpu.memory_space<vmem>>, vector<128x512xf32>
    %cst_75 = arith.constant dense<0.000000e+00> : vector<8x512xf32>
    %225 = tpu.matmul %216, %224, %cst_75 {dimension_numbers = #tpu.dot_dimension_numbers<[1], [0], [0], [1], [0, 0, 1, 1], [], []>} : vector<8x128xf32>, vector<128x512xf32>, vector<8x512xf32> -> vector<8x512xf32>
    %226 = arith.addf %223, %225 : vector<8x512xf32>
    %227 = vector.extract_strided_slice %226 {offsets = [0, 0], sizes = [8, 128], strides = [1, 1]} : vector<8x512xf32> to vector<8x128xf32>
    %228 = arith.negf %227 : vector<8x128xf32>
    %229 = math.exp %228 : vector<8x128xf32>
    %cst_76 = arith.constant 1.000000e+00 : f32
    %230 = vector.broadcast %cst_76 : f32 to vector<8x128xf32>
    %231 = arith.addf %230, %229 : vector<8x128xf32>
    %232 = arith.divf %230, %231 : vector<8x128xf32>
    %233 = vector.extract_strided_slice %226 {offsets = [0, 128], sizes = [8, 128], strides = [1, 1]} : vector<8x512xf32> to vector<8x128xf32>
    %234 = arith.negf %233 : vector<8x128xf32>
    %235 = math.exp %234 : vector<8x128xf32>
    %cst_77 = arith.constant 1.000000e+00 : f32
    %236 = vector.broadcast %cst_77 : f32 to vector<8x128xf32>
    %237 = arith.addf %236, %235 : vector<8x128xf32>
    %238 = arith.divf %236, %237 : vector<8x128xf32>
    %239 = vector.extract_strided_slice %226 {offsets = [0, 256], sizes = [8, 128], strides = [1, 1]} : vector<8x512xf32> to vector<8x128xf32>
    %240 = math.tanh %239 : vector<8x128xf32>
    %241 = vector.extract_strided_slice %226 {offsets = [0, 384], sizes = [8, 128], strides = [1, 1]} : vector<8x512xf32> to vector<8x128xf32>
    %242 = arith.negf %241 : vector<8x128xf32>
    %243 = math.exp %242 : vector<8x128xf32>
    %cst_78 = arith.constant 1.000000e+00 : f32
    %244 = vector.broadcast %cst_78 : f32 to vector<8x128xf32>
    %245 = arith.addf %244, %243 : vector<8x128xf32>
    %246 = arith.divf %244, %245 : vector<8x128xf32>
    %247 = arith.mulf %238, %214 : vector<8x128xf32>
    %248 = arith.mulf %232, %240 : vector<8x128xf32>
    %249 = arith.addf %247, %248 : vector<8x128xf32>
    %250 = math.tanh %249 : vector<8x128xf32>
    %251 = arith.mulf %246, %250 : vector<8x128xf32>
    %252 = arith.index_cast %c6_i32 : i32 to index
    %c0_79 = arith.constant 0 : index
    %c0_80 = arith.constant 0 : index
    %253 = vector.load %arg9[%252, %c0_79, %c0_80] : memref<8x8x128xf32, #tpu.memory_space<vmem>>, vector<1x8x128xf32>
    %254 = vector.shape_cast %253 : vector<1x8x128xf32> to vector<8x128xf32>
    %255 = vector.shape_cast %251 : vector<8x128xf32> to vector<1x8x128xf32>
    tpu.vector_store %arg9[%252, %c0_79, %c0_80], %255 {strides = array<i32>} : memref<8x8x128xf32, #tpu.memory_space<vmem>>, vector<1x8x128xf32>,
    %c7_i32 = arith.constant 7 : i32
    %256 = arith.index_cast %c7_i32 : i32 to index
    %c0_81 = arith.constant 0 : index
    %c0_82 = arith.constant 0 : index
    %257 = vector.load %arg8[%256, %c0_81, %c0_82] : memref<8x8x512xf32, #tpu.memory_space<vmem>>, vector<1x8x512xf32>
    %258 = vector.shape_cast %257 : vector<1x8x512xf32> to vector<8x512xf32>
    %c0_83 = arith.constant 0 : index
    %c0_84 = arith.constant 0 : index
    %259 = vector.load %arg3[%c0_83, %c0_84] : memref<128x512xf32, #tpu.memory_space<vmem>>, vector<128x512xf32>
    %cst_85 = arith.constant dense<0.000000e+00> : vector<8x512xf32>
    %260 = tpu.matmul %251, %259, %cst_85 {dimension_numbers = #tpu.dot_dimension_numbers<[1], [0], [0], [1], [0, 0, 1, 1], [], []>} : vector<8x128xf32>, vector<128x512xf32>, vector<8x512xf32> -> vector<8x512xf32>
    %261 = arith.addf %258, %260 : vector<8x512xf32>
    %262 = vector.extract_strided_slice %261 {offsets = [0, 0], sizes = [8, 128], strides = [1, 1]} : vector<8x512xf32> to vector<8x128xf32>
    %263 = arith.negf %262 : vector<8x128xf32>
    %264 = math.exp %263 : vector<8x128xf32>
    %cst_86 = arith.constant 1.000000e+00 : f32
    %265 = vector.broadcast %cst_86 : f32 to vector<8x128xf32>
    %266 = arith.addf %265, %264 : vector<8x128xf32>
    %267 = arith.divf %265, %266 : vector<8x128xf32>
    %268 = vector.extract_strided_slice %261 {offsets = [0, 128], sizes = [8, 128], strides = [1, 1]} : vector<8x512xf32> to vector<8x128xf32>
    %269 = arith.negf %268 : vector<8x128xf32>
    %270 = math.exp %269 : vector<8x128xf32>
    %cst_87 = arith.constant 1.000000e+00 : f32
    %271 = vector.broadcast %cst_87 : f32 to vector<8x128xf32>
    %272 = arith.addf %271, %270 : vector<8x128xf32>
    %273 = arith.divf %271, %272 : vector<8x128xf32>
    %274 = vector.extract_strided_slice %261 {offsets = [0, 256], sizes = [8, 128], strides = [1, 1]} : vector<8x512xf32> to vector<8x128xf32>
    %275 = math.tanh %274 : vector<8x128xf32>
    %276 = vector.extract_strided_slice %261 {offsets = [0, 384], sizes = [8, 128], strides = [1, 1]} : vector<8x512xf32> to vector<8x128xf32>
    %277 = arith.negf %276 : vector<8x128xf32>
    %278 = math.exp %277 : vector<8x128xf32>
    %cst_88 = arith.constant 1.000000e+00 : f32
    %279 = vector.broadcast %cst_88 : f32 to vector<8x128xf32>
    %280 = arith.addf %279, %278 : vector<8x128xf32>
    %281 = arith.divf %279, %280 : vector<8x128xf32>
    %282 = arith.mulf %273, %249 : vector<8x128xf32>
    %283 = arith.mulf %267, %275 : vector<8x128xf32>
    %284 = arith.addf %282, %283 : vector<8x128xf32>
    %285 = math.tanh %284 : vector<8x128xf32>
    %286 = arith.mulf %281, %285 : vector<8x128xf32>
    %287 = arith.index_cast %c7_i32 : i32 to index
    %c0_89 = arith.constant 0 : index
    %c0_90 = arith.constant 0 : index
    %288 = vector.load %arg9[%287, %c0_89, %c0_90] : memref<8x8x128xf32, #tpu.memory_space<vmem>>, vector<1x8x128xf32>
    %289 = vector.shape_cast %288 : vector<1x8x128xf32> to vector<8x128xf32>
    %290 = vector.shape_cast %286 : vector<8x128xf32> to vector<1x8x128xf32>
    tpu.vector_store %arg9[%287, %c0_89, %c0_90], %290 {strides = array<i32>} : memref<8x8x128xf32, #tpu.memory_space<vmem>>, vector<1x8x128xf32>,
    %c8_i32 = arith.constant 8 : i32
    %c0_91 = arith.constant 0 : index
    %c0_92 = arith.constant 0 : index
    %c0_93 = arith.constant 0 : index
    %291 = vector.load %arg9[%c0_91, %c0_92, %c0_93] : memref<8x8x128xf32, #tpu.memory_space<vmem>>, vector<8x8x128xf32>
    %292 = vector.shape_cast %291 : vector<8x8x128xf32> to vector<64x128xf32>
    %c0_94 = arith.constant 0 : index
    %c0_95 = arith.constant 0 : index
    %293 = vector.load %arg5[%c0_94, %c0_95] : memref<128x128xf32, #tpu.memory_space<vmem>>, vector<128x128xf32>
    %cst_96 = arith.constant dense<0.000000e+00> : vector<64x128xf32>
    %294 = tpu.matmul %292, %293, %cst_96 {dimension_numbers = #tpu.dot_dimension_numbers<[1], [0], [0], [1], [0, 0, 1, 1], [], []>} : vector<64x128xf32>, vector<128x128xf32>, vector<64x128xf32> -> vector<64x128xf32>
    %c0_97 = arith.constant 0 : index
    %c0_98 = arith.constant 0 : index
    %295 = vector.load %arg6[%c0_97, %c0_98] : memref<1x128xf32, #tpu.memory_space<vmem>>, vector<1x128xf32>
    %296 = vector.broadcast %295 : vector<1x128xf32> to vector<64x128xf32>
    %297 = arith.addf %294, %296 : vector<64x128xf32>
    %298 = vector.shape_cast %297 : vector<64x128xf32> to vector<8x8x128xf32>
    %c0_99 = arith.constant 0 : index
    %c0_100 = arith.constant 0 : index
    %c0_101 = arith.constant 0 : index
    %299 = vector.load %arg7[%c0_99, %c0_100, %c0_101] : memref<8x8x128xf32, #tpu.memory_space<vmem>>, vector<8x8x128xf32>
    tpu.vector_store %arg7[%c0_99, %c0_100, %c0_101], %298 {strides = array<i32>} : memref<8x8x128xf32, #tpu.memory_space<vmem>>, vector<8x8x128xf32>,
    return
  }
  func.func @transform_0(%arg0: i32) -> (i32, i32, i32) {
    %c0_i32 = arith.constant 0 : i32
    %c0_i32_0 = arith.constant 0 : i32
    %c0_i32_1 = arith.constant 0 : i32
    %c0_i32_2 = arith.constant 0 : i32
    return %c0_i32, %c0_i32_0, %c0_i32_1 : i32, i32, i32
  }
  func.func @transform_1(%arg0: i32) -> (i32, i32) {
    %c0_i32 = arith.constant 0 : i32
    %c0_i32_0 = arith.constant 0 : i32
    %c0_i32_1 = arith.constant 0 : i32
    return %c0_i32, %c0_i32_0 : i32, i32
  }
  func.func @transform_2(%arg0: i32) -> (i32, i32) {
    %c0_i32 = arith.constant 0 : i32
    %c0_i32_0 = arith.constant 0 : i32
    %c0_i32_1 = arith.constant 0 : i32
    return %c0_i32, %c0_i32_0 : i32, i32
  }
  func.func @transform_3(%arg0: i32) -> (i32, i32) {
    %c0_i32 = arith.constant 0 : i32
    %c0_i32_0 = arith.constant 0 : i32
    %c0_i32_1 = arith.constant 0 : i32
    return %c0_i32, %c0_i32_0 : i32, i32
  }
  func.func @transform_4(%arg0: i32) -> (i32, i32) {
    %c0_i32 = arith.constant 0 : i32
    %c0_i32_0 = arith.constant 0 : i32
    %c0_i32_1 = arith.constant 0 : i32
    return %c0_i32, %c0_i32_0 : i32, i32
  }
  func.func @transform_5(%arg0: i32) -> (i32, i32) {
    %c0_i32 = arith.constant 0 : i32
    %c0_i32_0 = arith.constant 0 : i32
    %c0_i32_1 = arith.constant 0 : i32
    return %c0_i32, %c0_i32_0 : i32, i32
  }
  func.func @transform_6(%arg0: i32) -> (i32, i32, i32) {
    %c0_i32 = arith.constant 0 : i32
    %c0_i32_0 = arith.constant 0 : i32
    %c0_i32_1 = arith.constant 0 : i32
    %c0_i32_2 = arith.constant 0 : i32
    return %c0_i32, %c0_i32_0, %c0_i32_1 : i32, i32, i32
  }
}

</mosaic_0001>

<llo_original>
// kernel: decoder_rnn_forward.1
$region0: #{decoder_rnn_forward.1}
  #allocation0 [shape = 'u32[]', space=smem, size = 0x4, offset = 0x4, fixed_abs, tag = 'smem constant byte address 0x4 - core index']
  #allocation1 [shape = 'u32[72,128]{1,0:T(1,128)}', space=vmem, size = 0x9000, scoped, tag = 'internal scratch']
  #allocation2 [shape = 'f32[8,8,512]{2,1,0:T(8,128)}', space=vmem, size = 0x20000, scoped, tag = 'scratch operand']
  #allocation3 [shape = 'f32[8,8,128]{2,1,0:T(8,128)}', space=vmem, size = 0x8000, scoped, tag = 'scratch operand']
  %s0 = inlined_call_operand.vmem [shape: f32[8,8,32], index: 0, kind: input, shape index: {}]
  %s1 = inlined_call_operand.vmem [shape: f32[32,512], index: 1, kind: input, shape index: {}]
  %s2 = inlined_call_operand.vmem [shape: f32[128,512], index: 2, kind: input, shape index: {}]
  %s3 = inlined_call_operand.vmem [shape: f32[1,512], index: 3, kind: input, shape index: {}]
  %s4 = inlined_call_operand.vmem [shape: f32[128,128], index: 4, kind: input, shape index: {}]
  %s5 = inlined_call_operand.vmem [shape: f32[1,128], index: 5, kind: input, shape index: {}]
  %s6 = inlined_call_operand.vmem [shape: f32[8,8,128], index: 6, kind: output, shape index: {}]
  %s7 = sld [smem:[#allocation0]]
  $region34: #{decoder_rnn_forward.1} parent=0
    _
  %s9 = ssub.s32 1, %s7
  %s10 = scalar_select 0, %s9, %s7
  // Predicated region
  $region2: #{decoder_rnn_forward.1} parent=0 // pred_check
    _
  $region3: #{decoder_rnn_forward.1} parent=0 // pred_check_branch
    %12 = sbr.rel (0) target = $region5
  $region4: #{decoder_rnn_forward.1} parent=0 // pred_region
    _
  $region5: #{decoder_rnn_forward.1} parent=0 // pred_fallthru
    _
  // Predicated region
  $region6: #{decoder_rnn_forward.1} parent=0 // pred_check
    _
  $region7: #{decoder_rnn_forward.1} parent=0 // pred_check_branch
    %14 = sbr.rel (0) target = $region9
  $region8: #{decoder_rnn_forward.1} parent=0 // pred_region
    _
  $region9: #{decoder_rnn_forward.1} parent=0 // pred_fallthru
    _
  // Predicated region
  $region10: #{decoder_rnn_forward.1} parent=0 // pred_check
    _
  $region11: #{decoder_rnn_forward.1} parent=0 // pred_check_branch
    %16 = sbr.rel (0) target = $region13
  $region12: #{decoder_rnn_forward.1} parent=0 // pred_region
    _
  $region13: #{decoder_rnn_forward.1} parent=0 // pred_fallthru
    _
  // Predicated region
  $region14: #{decoder_rnn_forward.1} parent=0 // pred_check
    _
  $region15: #{decoder_rnn_forward.1} parent=0 // pred_check_branch
    %18 = sbr.rel (0) target = $region17
  $region16: #{decoder_rnn_forward.1} parent=0 // pred_region
    _
  $region17: #{decoder_rnn_forward.1} parent=0 // pred_fallthru
    _
  // Predicated region
  $region18: #{decoder_rnn_forward.1} parent=0 // pred_check
    _
  $region19: #{decoder_rnn_forward.1} parent=0 // pred_check_branch
    %20 = sbr.rel (0) target = $region21
  $region20: #{decoder_rnn_forward.1} parent=0 // pred_region
    _
  $region21: #{decoder_rnn_forward.1} parent=0 // pred_fallthru
    _
  // Predicated region
  $region22: #{decoder_rnn_forward.1} parent=0 // pred_check
    _
  $region23: #{decoder_rnn_forward.1} parent=0 // pred_check_branch
    %22 = sbr.rel (0) target = $region25
  $region24: #{decoder_rnn_forward.1} parent=0 // pred_region
    _
  $region25: #{decoder_rnn_forward.1} parent=0 // pred_fallthru
    _
  %v23 = vld [vmem:[%s0] sm:$0xff]
  %v24 = vld [vmem:[%s0 + $0x8] sm:$0xff]
  %v25 = vld [vmem:[%s0 + $0x10] sm:$0xff]
  %v26 = vld [vmem:[%s0 + $0x18] sm:$0xff]
  %v27 = vld [vmem:[%s0 + $0x20] sm:$0xff]
  %v28 = vld [vmem:[%s0 + $0x28] sm:$0xff]
  %v29 = vld [vmem:[%s0 + $0x30] sm:$0xff]
  %v30 = vld [vmem:[%s0 + $0x38] sm:$0xff]
  %v31 = vld [vmem:[%s1] sm:$0xff]
  %v32 = vld [vmem:[%s1 + $0x8] sm:$0xff]
  %v33 = vld [vmem:[%s1 + $0x10] sm:$0xff]
  %v34 = vld [vmem:[%s1 + $0x18] sm:$0xff]
  %v35 = vld [vmem:[%s1 + $0x20] sm:$0xff]
  %v36 = vld [vmem:[%s1 + $0x28] sm:$0xff]
  %v37 = vld [vmem:[%s1 + $0x30] sm:$0xff]
  %v38 = vld [vmem:[%s1 + $0x38] sm:$0xff]
  %v39 = vld [vmem:[%s1 + $0x40] sm:$0xff]
  %v40 = vld [vmem:[%s1 + $0x48] sm:$0xff]
  %v41 = vld [vmem:[%s1 + $0x50] sm:$0xff]
  %v42 = vld [vmem:[%s1 + $0x58] sm:$0xff]
  %v43 = vld [vmem:[%s1 + $0x60] sm:$0xff]
  %v44 = vld [vmem:[%s1 + $0x68] sm:$0xff]
  %v45 = vld [vmem:[%s1 + $0x70] sm:$0xff]
  %v46 = vld [vmem:[%s1 + $0x78] sm:$0xff]
  %v47 = vld [vmem:[%s3] sm:$0xf]
  %v49 = vperm.slane %v47, 0
  %v50 = vperm.slane %v47, 1
  %v51 = vperm.slane %v47, 2
  %v52 = vperm.slane %v47, 3
  %vm57 = vcmask 261120
  %v59 = vsel %vm57, %v23, 0
  %v62 = vsel %vm57, %v24, 0
  %v65 = vsel %vm57, %v25, 0
  %v68 = vsel %vm57, %v26, 0
  %v71 = vsel %vm57, %v27, 0
  %v74 = vsel %vm57, %v28, 0
  %v77 = vsel %vm57, %v29, 0
  %v80 = vsel %vm57, %v30, 0
  %82 = vmatpush.msra.mxu0 0.0
  %83 = vmatpush.msra.mxu0 0.0
  %84 = vmatpush.msra.mxu0 0.0
  %85 = vmatpush.msra.mxu0 0.0
  %86 = vmatpush.msra.mxu0 0.0
  %87 = vmatpush.msra.mxu0 0.0
  %88 = vmatpush.msra.mxu0 0.0
  %89 = vmatpush.msra.mxu0 0.0
  %90 = vmatpush.msra.mxu0 0.0
  %91 = vmatpush.msra.mxu0 0.0
  %92 = vmatpush.msra.mxu0 0.0
  %93 = vmatpush.msra.mxu0 0.0
  %94 = vmatpush.msra.mxu0 %v43
  %95 = vmatpush.msra.mxu0 %v39
  %96 = vmatpush.msra.mxu0 %v35
  %97 = vmatpush.msra.mxu0 %v31
  %98 = vmatmul.f32.gmra.mxu0 %v59
  %v99 = vpop.f32.mrf.mxu0
  %v100 = vadd.f32 %v49, %v99
  %101 = vmatmul.f32.gmra.mxu0 %v62
  %v102 = vpop.f32.mrf.mxu0
  %v103 = vadd.f32 %v49, %v102
  %104 = vmatmul.f32.gmra.mxu0 %v65
  %v105 = vpop.f32.mrf.mxu0
  %v106 = vadd.f32 %v49, %v105
  %107 = vmatmul.f32.gmra.mxu0 %v68
  %v108 = vpop.f32.mrf.mxu0
  %v109 = vadd.f32 %v49, %v108
  %110 = vmatmul.f32.gmra.mxu0 %v71
  %v111 = vpop.f32.mrf.mxu0
  %v112 = vadd.f32 %v49, %v111
  %113 = vmatmul.f32.gmra.mxu0 %v74
  %v114 = vpop.f32.mrf.mxu0
  %v115 = vadd.f32 %v49, %v114
  %116 = vmatmul.f32.gmra.mxu0 %v77
  %v117 = vpop.f32.mrf.mxu0
  %v118 = vadd.f32 %v49, %v117
  %119 = vmatmul.f32.gmra.mxu0 %v80
  %v120 = vpop.f32.mrf.mxu0
  %v121 = vadd.f32 %v49, %v120
  %122 = vdwg.mxu0
  %123 = vmatpush.msra.mxu0 0.0
  %124 = vmatpush.msra.mxu0 0.0
  %125 = vmatpush.msra.mxu0 0.0
  %126 = vmatpush.msra.mxu0 0.0
  %127 = vmatpush.msra.mxu0 0.0
  %128 = vmatpush.msra.mxu0 0.0
  %129 = vmatpush.msra.mxu0 0.0
  %130 = vmatpush.msra.mxu0 0.0
  %131 = vmatpush.msra.mxu0 0.0
  %132 = vmatpush.msra.mxu0 0.0
  %133 = vmatpush.msra.mxu0 0.0
  %134 = vmatpush.msra.mxu0 0.0
  %135 = vmatpush.msra.mxu0 %v44
  %136 = vmatpush.msra.mxu0 %v40
  %137 = vmatpush.msra.mxu0 %v36
  %138 = vmatpush.msra.mxu0 %v32
  %139 = vmatmul.f32.gmra.mxu0 %v59
  %v140 = vpop.f32.mrf.mxu0
  %v141 = vadd.f32 %v50, %v140
  %142 = vmatmul.f32.gmra.mxu0 %v62
  %v143 = vpop.f32.mrf.mxu0
  %v144 = vadd.f32 %v50, %v143
  %145 = vmatmul.f32.gmra.mxu0 %v65
  %v146 = vpop.f32.mrf.mxu0
  %v147 = vadd.f32 %v50, %v146
  %148 = vmatmul.f32.gmra.mxu0 %v68
  %v149 = vpop.f32.mrf.mxu0
  %v150 = vadd.f32 %v50, %v149
  %151 = vmatmul.f32.gmra.mxu0 %v71
  %v152 = vpop.f32.mrf.mxu0
  %v153 = vadd.f32 %v50, %v152
  %154 = vmatmul.f32.gmra.mxu0 %v74
  %v155 = vpop.f32.mrf.mxu0
  %v156 = vadd.f32 %v50, %v155
  %157 = vmatmul.f32.gmra.mxu0 %v77
  %v158 = vpop.f32.mrf.mxu0
  %v159 = vadd.f32 %v50, %v158
  %160 = vmatmul.f32.gmra.mxu0 %v80
  %v161 = vpop.f32.mrf.mxu0
  %v162 = vadd.f32 %v50, %v161
  %163 = vdwg.mxu0
  %164 = vmatpush.msra.mxu0 0.0
  %165 = vmatpush.msra.mxu0 0.0
  %166 = vmatpush.msra.mxu0 0.0
  %167 = vmatpush.msra.mxu0 0.0
  %168 = vmatpush.msra.mxu0 0.0
  %169 = vmatpush.msra.mxu0 0.0
  %170 = vmatpush.msra.mxu0 0.0
  %171 = vmatpush.msra.mxu0 0.0
  %172 = vmatpush.msra.mxu0 0.0
  %173 = vmatpush.msra.mxu0 0.0
  %174 = vmatpush.msra.mxu0 0.0
  %175 = vmatpush.msra.mxu0 0.0
  %176 = vmatpush.msra.mxu0 %v45
  %177 = vmatpush.msra.mxu0 %v41
  %178 = vmatpush.msra.mxu0 %v37
  %179 = vmatpush.msra.mxu0 %v33
  %180 = vmatmul.f32.gmra.mxu0 %v59
  %v181 = vpop.f32.mrf.mxu0
  %v182 = vadd.f32 %v51, %v181
  %183 = vmatmul.f32.gmra.mxu0 %v62
  %v184 = vpop.f32.mrf.mxu0
  %v185 = vadd.f32 %v51, %v184
  %186 = vmatmul.f32.gmra.mxu0 %v65
  %v187 = vpop.f32.mrf.mxu0
  %v188 = vadd.f32 %v51, %v187
  %189 = vmatmul.f32.gmra.mxu0 %v68
  %v190 = vpop.f32.mrf.mxu0
  %v191 = vadd.f32 %v51, %v190
  %192 = vmatmul.f32.gmra.mxu0 %v71
  %v193 = vpop.f32.mrf.mxu0
  %v194 = vadd.f32 %v51, %v193
  %195 = vmatmul.f32.gmra.mxu0 %v74
  %v196 = vpop.f32.mrf.mxu0
  %v197 = vadd.f32 %v51, %v196
  %198 = vmatmul.f32.gmra.mxu0 %v77
  %v199 = vpop.f32.mrf.mxu0
  %v200 = vadd.f32 %v51, %v199
  %201 = vmatmul.f32.gmra.mxu0 %v80
  %v202 = vpop.f32.mrf.mxu0
  %v203 = vadd.f32 %v51, %v202
  %204 = vdwg.mxu0
  %205 = vmatpush.msra.mxu0 0.0
  %206 = vmatpush.msra.mxu0 0.0
  %207 = vmatpush.msra.mxu0 0.0
  %208 = vmatpush.msra.mxu0 0.0
  %209 = vmatpush.msra.mxu0 0.0
  %210 = vmatpush.msra.mxu0 0.0
  %211 = vmatpush.msra.mxu0 0.0
  %212 = vmatpush.msra.mxu0 0.0
  %213 = vmatpush.msra.mxu0 0.0
  %214 = vmatpush.msra.mxu0 0.0
  %215 = vmatpush.msra.mxu0 0.0
  %216 = vmatpush.msra.mxu0 0.0
  %217 = vmatpush.msra.mxu0 %v46
  %218 = vmatpush.msra.mxu0 %v42
  %219 = vmatpush.msra.mxu0 %v38
  %220 = vmatpush.msra.mxu0 %v34
  %221 = vmatmul.f32.gmra.mxu0 %v59
  %v222 = vpop.f32.mrf.mxu0
  %v223 = vadd.f32 %v52, %v222
  %224 = vmatmul.f32.gmra.mxu0 %v62
  %v225 = vpop.f32.mrf.mxu0
  %v226 = vadd.f32 %v52, %v225
  %227 = vmatmul.f32.gmra.mxu0 %v65
  %v228 = vpop.f32.mrf.mxu0
  %v229 = vadd.f32 %v52, %v228
  %230 = vmatmul.f32.gmra.mxu0 %v68
  %v231 = vpop.f32.mrf.mxu0
  %v232 = vadd.f32 %v52, %v231
  %233 = vmatmul.f32.gmra.mxu0 %v71
  %v234 = vpop.f32.mrf.mxu0
  %v235 = vadd.f32 %v52, %v234
  %236 = vmatmul.f32.gmra.mxu0 %v74
  %v237 = vpop.f32.mrf.mxu0
  %v238 = vadd.f32 %v52, %v237
  %239 = vmatmul.f32.gmra.mxu0 %v77
  %v240 = vpop.f32.mrf.mxu0
  %v241 = vadd.f32 %v52, %v240
  %242 = vmatmul.f32.gmra.mxu0 %v80
  %v243 = vpop.f32.mrf.mxu0
  %v244 = vadd.f32 %v52, %v243
  %245 = vdwg.mxu0
  %246 = vst [vmem:[#allocation2] sm:$0xff] %v100
  %247 = vst [vmem:[#allocation2 + $0x8] sm:$0xff] %v141
  %248 = vst [vmem:[#allocation2 + $0x10] sm:$0xff] %v182
  %249 = vst [vmem:[#allocation2 + $0x18] sm:$0xff] %v223
  %250 = vst [vmem:[#allocation2 + $0x20] sm:$0xff] %v103
  %251 = vst [vmem:[#allocation2 + $0x28] sm:$0xff] %v144
  %252 = vst [vmem:[#allocation2 + $0x30] sm:$0xff] %v185
  %253 = vst [vmem:[#allocation2 + $0x38] sm:$0xff] %v226
  %254 = vst [vmem:[#allocation2 + $0x40] sm:$0xff] %v106
  %255 = vst [vmem:[#allocation2 + $0x48] sm:$0xff] %v147
  %256 = vst [vmem:[#allocation2 + $0x50] sm:$0xff] %v188
  %257 = vst [vmem:[#allocation2 + $0x58] sm:$0xff] %v229
  %258 = vst [vmem:[#allocation2 + $0x60] sm:$0xff] %v109
  %259 = vst [vmem:[#allocation2 + $0x68] sm:$0xff] %v150
  %260 = vst [vmem:[#allocation2 + $0x70] sm:$0xff] %v191
  %261 = vst [vmem:[#allocation2 + $0x78] sm:$0xff] %v232
  %262 = vst [vmem:[#allocation2 + $0x80] sm:$0xff] %v112
  %263 = vst [vmem:[#allocation2 + $0x88] sm:$0xff] %v153
  %264 = vst [vmem:[#allocation2 + $0x90] sm:$0xff] %v194
  %265 = vst [vmem:[#allocation2 + $0x98] sm:$0xff] %v235
  %266 = vst [vmem:[#allocation2 + $0xa0] sm:$0xff] %v115
  %267 = vst [vmem:[#allocation2 + $0xa8] sm:$0xff] %v156
  %268 = vst [vmem:[#allocation2 + $0xb0] sm:$0xff] %v197
  %269 = vst [vmem:[#allocation2 + $0xb8] sm:$0xff] %v238
  %270 = vst [vmem:[#allocation2 + $0xc0] sm:$0xff] %v118
  %271 = vst [vmem:[#allocation2 + $0xc8] sm:$0xff] %v159
  %272 = vst [vmem:[#allocation2 + $0xd0] sm:$0xff] %v200
  %273 = vst [vmem:[#allocation2 + $0xd8] sm:$0xff] %v241
  %274 = vst [vmem:[#allocation2 + $0xe0] sm:$0xff] %v121
  %275 = vst [vmem:[#allocation2 + $0xe8] sm:$0xff] %v162
  %276 = vst [vmem:[#allocation2 + $0xf0] sm:$0xff] %v203
  %277 = vst [vmem:[#allocation2 + $0xf8] sm:$0xff] %v244
  %v278 = vld [vmem:[#allocation2] sm:$0xff]
  %v279 = vld [vmem:[#allocation2 + $0x8] sm:$0xff]
  %v280 = vld [vmem:[#allocation2 + $0x10] sm:$0xff]
  %v281 = vld [vmem:[#allocation2 + $0x18] sm:$0xff]
  %v282 = vld [vmem:[%s2] sm:$0xff]
  %v283 = vld [vmem:[%s2 + $0x8] sm:$0xff]
  %v284 = vld [vmem:[%s2 + $0x10] sm:$0xff]
  %v285 = vld [vmem:[%s2 + $0x18] sm:$0xff]
  %v286 = vld [vmem:[%s2 + $0x20] sm:$0xff]
  %v287 = vld [vmem:[%s2 + $0x28] sm:$0xff]
  %v288 = vld [vmem:[%s2 + $0x30] sm:$0xff]
  %v289 = vld [vmem:[%s2 + $0x38] sm:$0xff]
  %v290 = vld [vmem:[%s2 + $0x40] sm:$0xff]
  %v291 = vld [vmem:[%s2 + $0x48] sm:$0xff]
  %v292 = vld [vmem:[%s2 + $0x50] sm:$0xff]
  %v293 = vld [vmem:[%s2 + $0x58] sm:$0xff]
  %v294 = vld [vmem:[%s2 + $0x60] sm:$0xff]
  %v295 = vld [vmem:[%s2 + $0x68] sm:$0xff]
  %v296 = vld [vmem:[%s2 + $0x70] sm:$0xff]
  %v297 = vld [vmem:[%s2 + $0x78] sm:$0xff]
  %v298 = vld [vmem:[%s2 + $0x80] sm:$0xff]
  %v299 = vld [vmem:[%s2 + $0x88] sm:$0xff]
  %v300 = vld [vmem:[%s2 + $0x90] sm:$0xff]
  %v301 = vld [vmem:[%s2 + $0x98] sm:$0xff]
  %v302 = vld [vmem:[%s2 + $0xa0] sm:$0xff]
  %v303 = vld [vmem:[%s2 + $0xa8] sm:$0xff]
  %v304 = vld [vmem:[%s2 + $0xb0] sm:$0xff]
  %v305 = vld [vmem:[%s2 + $0xb8] sm:$0xff]
  %v306 = vld [vmem:[%s2 + $0xc0] sm:$0xff]
  %v307 = vld [vmem:[%s2 + $0xc8] sm:$0xff]
  %v308 = vld [vmem:[%s2 + $0xd0] sm:$0xff]
  %v309 = vld [vmem:[%s2 + $0xd8] sm:$0xff]
  %v310 = vld [vmem:[%s2 + $0xe0] sm:$0xff]
  %v311 = vld [vmem:[%s2 + $0xe8] sm:$0xff]
  %v312 = vld [vmem:[%s2 + $0xf0] sm:$0xff]
  %v313 = vld [vmem:[%s2 + $0xf8] sm:$0xff]
  %v314 = vld [vmem:[%s2 + $0x100] sm:$0xff]
  %v315 = vld [vmem:[%s2 + $0x108] sm:$0xff]
  %v316 = vld [vmem:[%s2 + $0x110] sm:$0xff]
  %v317 = vld [vmem:[%s2 + $0x118] sm:$0xff]
  %v318 = vld [vmem:[%s2 + $0x120] sm:$0xff]
  %v319 = vld [vmem:[%s2 + $0x128] sm:$0xff]
  %v320 = vld [vmem:[%s2 + $0x130] sm:$0xff]
  %v321 = vld [vmem:[%s2 + $0x138] sm:$0xff]
  %v322 = vld [vmem:[%s2 + $0x140] sm:$0xff]
  %v323 = vld [vmem:[%s2 + $0x148] sm:$0xff]
  %v324 = vld [vmem:[%s2 + $0x150] sm:$0xff]
  %v325 = vld [vmem:[%s2 + $0x158] sm:$0xff]
  %v326 = vld [vmem:[%s2 + $0x160] sm:$0xff]
  %v327 = vld [vmem:[%s2 + $0x168] sm:$0xff]
  %v328 = vld [vmem:[%s2 + $0x170] sm:$0xff]
  %v329 = vld [vmem:[%s2 + $0x178] sm:$0xff]
  %v330 = vld [vmem:[%s2 + $0x180] sm:$0xff]
  %v331 = vld [vmem:[%s2 + $0x188] sm:$0xff]
  %v332 = vld [vmem:[%s2 + $0x190] sm:$0xff]
  %v333 = vld [vmem:[%s2 + $0x198] sm:$0xff]
  %v334 = vld [vmem:[%s2 + $0x1a0] sm:$0xff]
  %v335 = vld [vmem:[%s2 + $0x1a8] sm:$0xff]
  %v336 = vld [vmem:[%s2 + $0x1b0] sm:$0xff]
  %v337 = vld [vmem:[%s2 + $0x1b8] sm:$0xff]
  %v338 = vld [vmem:[%s2 + $0x1c0] sm:$0xff]
  %v339 = vld [vmem:[%s2 + $0x1c8] sm:$0xff]
  %v340 = vld [vmem:[%s2 + $0x1d0] sm:$0xff]
  %v341 = vld [vmem:[%s2 + $0x1d8] sm:$0xff]
  %v342 = vld [vmem:[%s2 + $0x1e0] sm:$0xff]
  %v343 = vld [vmem:[%s2 + $0x1e8] sm:$0xff]
  %v344 = vld [vmem:[%s2 + $0x1f0] sm:$0xff]
  %v345 = vld [vmem:[%s2 + $0x1f8] sm:$0xff]
  %346 = vmatpush.msra.mxu0 %v342
  %347 = vmatpush.msra.mxu0 %v338
  %348 = vmatpush.msra.mxu0 %v334
  %349 = vmatpush.msra.mxu0 %v330
  %350 = vmatpush.msra.mxu0 %v326
  %351 = vmatpush.msra.mxu0 %v322
  %352 = vmatpush.msra.mxu0 %v318
  %353 = vmatpush.msra.mxu0 %v314
  %354 = vmatpush.msra.mxu0 %v310
  %355 = vmatpush.msra.mxu0 %v306
  %356 = vmatpush.msra.mxu0 %v302
  %357 = vmatpush.msra.mxu0 %v298
  %358 = vmatpush.msra.mxu0 %v294
  %359 = vmatpush.msra.mxu0 %v290
  %360 = vmatpush.msra.mxu0 %v286
  %361 = vmatpush.msra.mxu0 %v282
  %362 = vmatmul.f32.gmra.mxu0 0.0
  %v363 = vpop.f32.mrf.mxu0
  %v364 = vadd.f32 0.0, %v363
  %365 = vdwg.mxu0
  %366 = vmatpush.msra.mxu0 %v343
  %367 = vmatpush.msra.mxu0 %v339
  %368 = vmatpush.msra.mxu0 %v335
  %369 = vmatpush.msra.mxu0 %v331
  %370 = vmatpush.msra.mxu0 %v327
  %371 = vmatpush.msra.mxu0 %v323
  %372 = vmatpush.msra.mxu0 %v319
  %373 = vmatpush.msra.mxu0 %v315
  %374 = vmatpush.msra.mxu0 %v311
  %375 = vmatpush.msra.mxu0 %v307
  %376 = vmatpush.msra.mxu0 %v303
  %377 = vmatpush.msra.mxu0 %v299
  %378 = vmatpush.msra.mxu0 %v295
  %379 = vmatpush.msra.mxu0 %v291
  %380 = vmatpush.msra.mxu0 %v287
  %381 = vmatpush.msra.mxu0 %v283
  %382 = vmatmul.f32.gmra.mxu0 0.0
  %v383 = vpop.f32.mrf.mxu0
  %v384 = vadd.f32 0.0, %v383
  %385 = vdwg.mxu0
  %386 = vmatpush.msra.mxu0 %v344
  %387 = vmatpush.msra.mxu0 %v340
  %388 = vmatpush.msra.mxu0 %v336
  %389 = vmatpush.msra.mxu0 %v332
  %390 = vmatpush.msra.mxu0 %v328
  %391 = vmatpush.msra.mxu0 %v324
  %392 = vmatpush.msra.mxu0 %v320
  %393 = vmatpush.msra.mxu0 %v316
  %394 = vmatpush.msra.mxu0 %v312
  %395 = vmatpush.msra.mxu0 %v308
  %396 = vmatpush.msra.mxu0 %v304
  %397 = vmatpush.msra.mxu0 %v300
  %398 = vmatpush.msra.mxu0 %v296
  %399 = vmatpush.msra.mxu0 %v292
  %400 = vmatpush.msra.mxu0 %v288
  %401 = vmatpush.msra.mxu0 %v284
  %402 = vmatmul.f32.gmra.mxu0 0.0
  %v403 = vpop.f32.mrf.mxu0
  %v404 = vadd.f32 0.0, %v403
  %405 = vdwg.mxu0
  %406 = vmatpush.msra.mxu0 %v345
  %407 = vmatpush.msra.mxu0 %v341
  %408 = vmatpush.msra.mxu0 %v337
  %409 = vmatpush.msra.mxu0 %v333
  %410 = vmatpush.msra.mxu0 %v329
  %411 = vmatpush.msra.mxu0 %v325
  %412 = vmatpush.msra.mxu0 %v321
  %413 = vmatpush.msra.mxu0 %v317
  %414 = vmatpush.msra.mxu0 %v313
  %415 = vmatpush.msra.mxu0 %v309
  %416 = vmatpush.msra.mxu0 %v305
  %417 = vmatpush.msra.mxu0 %v301
  %418 = vmatpush.msra.mxu0 %v297
  %419 = vmatpush.msra.mxu0 %v293
  %420 = vmatpush.msra.mxu0 %v289
  %421 = vmatpush.msra.mxu0 %v285
  %422 = vmatmul.f32.gmra.mxu0 0.0
  %v423 = vpop.f32.mrf.mxu0
  %v424 = vadd.f32 0.0, %v423
  %425 = vdwg.mxu0
  %v426 = vadd.f32 %v278, %v364
  %v427 = vadd.f32 %v279, %v384
  %v428 = vadd.f32 %v280, %v404
  %v429 = vadd.f32 %v281, %v424
  %v430 = vxor.u32 %v426, 2147483648
  %v431 = vmul.f32 %v430, 1.442695
  %v432 = vpow.pop %v431
  %v433 = vadd.f32 %v432, 1.0
  %v434 = vrcp.pop %v433
  %v435 = vmul.f32 %v433, %v434
  %v436 = vsub.f32 1.0, %v435
  %v437 = vmul.f32 %v434, %v436
  %v438 = vadd.f32 %v434, %v437
  %vm439 = vweird.f32 %v433
  %vm440 = vweird.f32 %v434
  %vm441 = vmor %vm439, %vm440
  %v442 = vsel %vm441, %v434, %v438
  %v443 = vand.u32 2147483647, %v433
  %vm444 = vcmp.eq.f32.partialorder %v443, 8.507059e+37
  %v445 = vand.u32 %v433, 2147483648
  %v446 = vor.u32 1.1754944e-38, %v445
  %v447 = vsel %vm444, %v446, %v442
  %v448 = vmul.f32 1.0, %v447
  %v449 = vxor.u32 %v427, 2147483648
  %v450 = vmul.f32 %v449, 1.442695
  %v451 = vpow.pop %v450
  %v452 = vadd.f32 %v451, 1.0
  %v453 = vrcp.pop %v452
  %v454 = vmul.f32 %v452, %v453
  %v455 = vsub.f32 1.0, %v454
  %v456 = vmul.f32 %v453, %v455
  %v457 = vadd.f32 %v453, %v456
  %vm458 = vweird.f32 %v452
  %vm459 = vweird.f32 %v453
  %vm460 = vmor %vm458, %vm459
  %v461 = vsel %vm460, %v453, %v457
  %v462 = vand.u32 2147483647, %v452
  %vm463 = vcmp.eq.f32.partialorder %v462, 8.507059e+37
  %v464 = vand.u32 %v452, 2147483648
  %v465 = vor.u32 1.1754944e-38, %v464
  %v466 = vsel %vm463, %v465, %v461
  %v467 = vmul.f32 1.0, %v466
  %v468 = vtanh.pop %v428
  %v469 = vxor.u32 %v429, 2147483648
  %v470 = vmul.f32 %v469, 1.442695
  %v471 = vpow.pop %v470
  %v472 = vadd.f32 %v471, 1.0
  %v473 = vrcp.pop %v472
  %v474 = vmul.f32 %v472, %v473
  %v475 = vsub.f32 1.0, %v474
  %v476 = vmul.f32 %v473, %v475
  %v477 = vadd.f32 %v473, %v476
  %vm478 = vweird.f32 %v472
  %vm479 = vweird.f32 %v473
  %vm480 = vmor %vm478, %vm479
  %v481 = vsel %vm480, %v473, %v477
  %v482 = vand.u32 2147483647, %v472
  %vm483 = vcmp.eq.f32.partialorder %v482, 8.507059e+37
  %v484 = vand.u32 %v472, 2147483648
  %v485 = vor.u32 1.1754944e-38, %v484
  %v486 = vsel %vm483, %v485, %v481
  %v487 = vmul.f32 1.0, %v486
  %v488 = vmul.f32 %v467, 0.0
  %v489 = vmul.f32 %v448, %v468
  %v490 = vadd.f32 %v488, %v489
  %v491 = vtanh.pop %v490
  %v492 = vmul.f32 %v487, %v491
  %493 = vst [vmem:[#allocation3] sm:$0xff] %v492
  %s494 = scalar_lea.vmem [#allocation2], 32
  %v495 = vld [vmem:[%s494] sm:$0xff]
  %v496 = vld [vmem:[%s494 + $0x8] sm:$0xff]
  %v497 = vld [vmem:[%s494 + $0x10] sm:$0xff]
  %v498 = vld [vmem:[%s494 + $0x18] sm:$0xff]
  %v499 = vld [vmem:[%s2] sm:$0xff]
  %v500 = vld [vmem:[%s2 + $0x8] sm:$0xff]
  %v501 = vld [vmem:[%s2 + $0x10] sm:$0xff]
  %v502 = vld [vmem:[%s2 + $0x18] sm:$0xff]
  %v503 = vld [vmem:[%s2 + $0x20] sm:$0xff]
  %v504 = vld [vmem:[%s2 + $0x28] sm:$0xff]
  %v505 = vld [vmem:[%s2 + $0x30] sm:$0xff]
  %v506 = vld [vmem:[%s2 + $0x38] sm:$0xff]
  %v507 = vld [vmem:[%s2 + $0x40] sm:$0xff]
  %v508 = vld [vmem:[%s2 + $0x48] sm:$0xff]
  %v509 = vld [vmem:[%s2 + $0x50] sm:$0xff]
  %v510 = vld [vmem:[%s2 + $0x58] sm:$0xff]
  %v511 = vld [vmem:[%s2 + $0x60] sm:$0xff]
  %v512 = vld [vmem:[%s2 + $0x68] sm:$0xff]
  %v513 = vld [vmem:[%s2 + $0x70] sm:$0xff]
  %v514 = vld [vmem:[%s2 + $0x78] sm:$0xff]
  %v515 = vld [vmem:[%s2 + $0x80] sm:$0xff]
  %v516 = vld [vmem:[%s2 + $0x88] sm:$0xff]
  %v517 = vld [vmem:[%s2 + $0x90] sm:$0xff]
  %v518 = vld [vmem:[%s2 + $0x98] sm:$0xff]
  %v519 = vld [vmem:[%s2 + $0xa0] sm:$0xff]
  %v520 = vld [vmem:[%s2 + $0xa8] sm:$0xff]
  %v521 = vld [vmem:[%s2 + $0xb0] sm:$0xff]
  %v522 = vld [vmem:[%s2 + $0xb8] sm:$0xff]
  %v523 = vld [vmem:[%s2 + $0xc0] sm:$0xff]
  %v524 = vld [vmem:[%s2 + $0xc8] sm:$0xff]
  %v525 = vld [vmem:[%s2 + $0xd0] sm:$0xff]
  %v526 = vld [vmem:[%s2 + $0xd8] sm:$0xff]
  %v527 = vld [vmem:[%s2 + $0xe0] sm:$0xff]
  %v528 = vld [vmem:[%s2 + $0xe8] sm:$0xff]
  %v529 = vld [vmem:[%s2 + $0xf0] sm:$0xff]
  %v530 = vld [vmem:[%s2 + $0xf8] sm:$0xff]
  %v531 = vld [vmem:[%s2 + $0x100] sm:$0xff]
  %v532 = vld [vmem:[%s2 + $0x108] sm:$0xff]
  %v533 = vld [vmem:[%s2 + $0x110] sm:$0xff]
  %v534 = vld [vmem:[%s2 + $0x118] sm:$0xff]
  %v535 = vld [vmem:[%s2 + $0x120] sm:$0xff]
  %v536 = vld [vmem:[%s2 + $0x128] sm:$0xff]
  %v537 = vld [vmem:[%s2 + $0x130] sm:$0xff]
  %v538 = vld [vmem:[%s2 + $0x138] sm:$0xff]
  %v539 = vld [vmem:[%s2 + $0x140] sm:$0xff]
  %v540 = vld [vmem:[%s2 + $0x148] sm:$0xff]
  %v541 = vld [vmem:[%s2 + $0x150] sm:$0xff]
  %v542 = vld [vmem:[%s2 + $0x158] sm:$0xff]
  %v543 = vld [vmem:[%s2 + $0x160] sm:$0xff]
  %v544 = vld [vmem:[%s2 + $0x168] sm:$0xff]
  %v545 = vld [vmem:[%s2 + $0x170] sm:$0xff]
  %v546 = vld [vmem:[%s2 + $0x178] sm:$0xff]
  %v547 = vld [vmem:[%s2 + $0x180] sm:$0xff]
  %v548 = vld [vmem:[%s2 + $0x188] sm:$0xff]
  %v549 = vld [vmem:[%s2 + $0x190] sm:$0xff]
  %v550 = vld [vmem:[%s2 + $0x198] sm:$0xff]
  %v551 = vld [vmem:[%s2 + $0x1a0] sm:$0xff]
  %v552 = vld [vmem:[%s2 + $0x1a8] sm:$0xff]
  %v553 = vld [vmem:[%s2 + $0x1b0] sm:$0xff]
  %v554 = vld [vmem:[%s2 + $0x1b8] sm:$0xff]
  %v555 = vld [vmem:[%s2 + $0x1c0] sm:$0xff]
  %v556 = vld [vmem:[%s2 + $0x1c8] sm:$0xff]
  %v557 = vld [vmem:[%s2 + $0x1d0] sm:$0xff]
  %v558 = vld [vmem:[%s2 + $0x1d8] sm:$0xff]
  %v559 = vld [vmem:[%s2 + $0x1e0] sm:$0xff]
  %v560 = vld [vmem:[%s2 + $0x1e8] sm:$0xff]
  %v561 = vld [vmem:[%s2 + $0x1f0] sm:$0xff]
  %v562 = vld [vmem:[%s2 + $0x1f8] sm:$0xff]
  %563 = vmatpush.msra.mxu0 %v559
  %564 = vmatpush.msra.mxu0 %v555
  %565 = vmatpush.msra.mxu0 %v551
  %566 = vmatpush.msra.mxu0 %v547
  %567 = vmatpush.msra.mxu0 %v543
  %568 = vmatpush.msra.mxu0 %v539
  %569 = vmatpush.msra.mxu0 %v535
  %570 = vmatpush.msra.mxu0 %v531
  %571 = vmatpush.msra.mxu0 %v527
  %572 = vmatpush.msra.mxu0 %v523
  %573 = vmatpush.msra.mxu0 %v519
  %574 = vmatpush.msra.mxu0 %v515
  %575 = vmatpush.msra.mxu0 %v511
  %576 = vmatpush.msra.mxu0 %v507
  %577 = vmatpush.msra.mxu0 %v503
  %578 = vmatpush.msra.mxu0 %v499
  %579 = vmatmul.f32.gmra.mxu0 %v492
  %v580 = vpop.f32.mrf.mxu0
  %v581 = vadd.f32 0.0, %v580
  %582 = vdwg.mxu0
  %583 = vmatpush.msra.mxu0 %v560
  %584 = vmatpush.msra.mxu0 %v556
  %585 = vmatpush.msra.mxu0 %v552
  %586 = vmatpush.msra.mxu0 %v548
  %587 = vmatpush.msra.mxu0 %v544
  %588 = vmatpush.msra.mxu0 %v540
  %589 = vmatpush.msra.mxu0 %v536
  %590 = vmatpush.msra.mxu0 %v532
  %591 = vmatpush.msra.mxu0 %v528
  %592 = vmatpush.msra.mxu0 %v524
  %593 = vmatpush.msra.mxu0 %v520
  %594 = vmatpush.msra.mxu0 %v516
  %595 = vmatpush.msra.mxu0 %v512
  %596 = vmatpush.msra.mxu0 %v508
  %597 = vmatpush.msra.mxu0 %v504
  %598 = vmatpush.msra.mxu0 %v500
  %599 = vmatmul.f32.gmra.mxu0 %v492
  %v600 = vpop.f32.mrf.mxu0
  %v601 = vadd.f32 0.0, %v600
  %602 = vdwg.mxu0
  %603 = vmatpush.msra.mxu0 %v561
  %604 = vmatpush.msra.mxu0 %v557
  %605 = vmatpush.msra.mxu0 %v553
  %606 = vmatpush.msra.mxu0 %v549
  %607 = vmatpush.msra.mxu0 %v545
  %608 = vmatpush.msra.mxu0 %v541
  %609 = vmatpush.msra.mxu0 %v537
  %610 = vmatpush.msra.mxu0 %v533
  %611 = vmatpush.msra.mxu0 %v529
  %612 = vmatpush.msra.mxu0 %v525
  %613 = vmatpush.msra.mxu0 %v521
  %614 = vmatpush.msra.mxu0 %v517
  %615 = vmatpush.msra.mxu0 %v513
  %616 = vmatpush.msra.mxu0 %v509
  %617 = vmatpush.msra.mxu0 %v505
  %618 = vmatpush.msra.mxu0 %v501
  %619 = vmatmul.f32.gmra.mxu0 %v492
  %v620 = vpop.f32.mrf.mxu0
  %v621 = vadd.f32 0.0, %v620
  %622 = vdwg.mxu0
  %623 = vmatpush.msra.mxu0 %v562
  %624 = vmatpush.msra.mxu0 %v558
  %625 = vmatpush.msra.mxu0 %v554
  %626 = vmatpush.msra.mxu0 %v550
  %627 = vmatpush.msra.mxu0 %v546
  %628 = vmatpush.msra.mxu0 %v542
  %629 = vmatpush.msra.mxu0 %v538
  %630 = vmatpush.msra.mxu0 %v534
  %631 = vmatpush.msra.mxu0 %v530
  %632 = vmatpush.msra.mxu0 %v526
  %633 = vmatpush.msra.mxu0 %v522
  %634 = vmatpush.msra.mxu0 %v518
  %635 = vmatpush.msra.mxu0 %v514
  %636 = vmatpush.msra.mxu0 %v510
  %637 = vmatpush.msra.mxu0 %v506
  %638 = vmatpush.msra.mxu0 %v502
  %639 = vmatmul.f32.gmra.mxu0 %v492
  %v640 = vpop.f32.mrf.mxu0
  %v641 = vadd.f32 0.0, %v640
  %642 = vdwg.mxu0
  %v643 = vadd.f32 %v495, %v581
  %v644 = vadd.f32 %v496, %v601
  %v645 = vadd.f32 %v497, %v621
  %v646 = vadd.f32 %v498, %v641
  %v647 = vxor.u32 %v643, 2147483648
  %v648 = vmul.f32 %v647, 1.442695
  %v649 = vpow.pop %v648
  %v650 = vadd.f32 %v649, 1.0
  %v651 = vrcp.pop %v650
  %v652 = vmul.f32 %v650, %v651
  %v653 = vsub.f32 1.0, %v652
  %v654 = vmul.f32 %v651, %v653
  %v655 = vadd.f32 %v651, %v654
  %vm656 = vweird.f32 %v650
  %vm657 = vweird.f32 %v651
  %vm658 = vmor %vm656, %vm657
  %v659 = vsel %vm658, %v651, %v655
  %v660 = vand.u32 2147483647, %v650
  %vm661 = vcmp.eq.f32.partialorder %v660, 8.507059e+37
  %v662 = vand.u32 %v650, 2147483648
  %v663 = vor.u32 1.1754944e-38, %v662
  %v664 = vsel %vm661, %v663, %v659
  %v665 = vmul.f32 1.0, %v664
  %v666 = vxor.u32 %v644, 2147483648
  %v667 = vmul.f32 %v666, 1.442695
  %v668 = vpow.pop %v667
  %v669 = vadd.f32 %v668, 1.0
  %v670 = vrcp.pop %v669
  %v671 = vmul.f32 %v669, %v670
  %v672 = vsub.f32 1.0, %v671
  %v673 = vmul.f32 %v670, %v672
  %v674 = vadd.f32 %v670, %v673
  %vm675 = vweird.f32 %v669
  %vm676 = vweird.f32 %v670
  %vm677 = vmor %vm675, %vm676
  %v678 = vsel %vm677, %v670, %v674
  %v679 = vand.u32 2147483647, %v669
  %vm680 = vcmp.eq.f32.partialorder %v679, 8.507059e+37
  %v681 = vand.u32 %v669, 2147483648
  %v682 = vor.u32 1.1754944e-38, %v681
  %v683 = vsel %vm680, %v682, %v678
  %v684 = vmul.f32 1.0, %v683
  %v685 = vtanh.pop %v645
  %v686 = vxor.u32 %v646, 2147483648
  %v687 = vmul.f32 %v686, 1.442695
  %v688 = vpow.pop %v687
  %v689 = vadd.f32 %v688, 1.0
  %v690 = vrcp.pop %v689
  %v691 = vmul.f32 %v689, %v690
  %v692 = vsub.f32 1.0, %v691
  %v693 = vmul.f32 %v690, %v692
  %v694 = vadd.f32 %v690, %v693
  %vm695 = vweird.f32 %v689
  %vm696 = vweird.f32 %v690
  %vm697 = vmor %vm695, %vm696
  %v698 = vsel %vm697, %v690, %v694
  %v699 = vand.u32 2147483647, %v689
  %vm700 = vcmp.eq.f32.partialorder %v699, 8.507059e+37
  %v701 = vand.u32 %v689, 2147483648
  %v702 = vor.u32 1.1754944e-38, %v701
  %v703 = vsel %vm700, %v702, %v698
  %v704 = vmul.f32 1.0, %v703
  %v705 = vmul.f32 %v684, %v490
  %v706 = vmul.f32 %v665, %v685
  %v707 = vadd.f32 %v705, %v706
  %v708 = vtanh.pop %v707
  %v709 = vmul.f32 %v704, %v708
  %s710 = scalar_lea.vmem [#allocation3], 8
  %711 = vst [vmem:[%s710] sm:$0xff] %v709
  %s712 = scalar_lea.vmem [#allocation2], 64
  %v713 = vld [vmem:[%s712] sm:$0xff]
  %v714 = vld [vmem:[%s712 + $0x8] sm:$0xff]
  %v715 = vld [vmem:[%s712 + $0x10] sm:$0xff]
  %v716 = vld [vmem:[%s712 + $0x18] sm:$0xff]
  %v717 = vld [vmem:[%s2] sm:$0xff]
  %v718 = vld [vmem:[%s2 + $0x8] sm:$0xff]
  %v719 = vld [vmem:[%s2 + $0x10] sm:$0xff]
  %v720 = vld [vmem:[%s2 + $0x18] sm:$0xff]
  %v721 = vld [vmem:[%s2 + $0x20] sm:$0xff]
  %v722 = vld [vmem:[%s2 + $0x28] sm:$0xff]
  %v723 = vld [vmem:[%s2 + $0x30] sm:$0xff]
  %v724 = vld [vmem:[%s2 + $0x38] sm:$0xff]
  %v725 = vld [vmem:[%s2 + $0x40] sm:$0xff]
  %v726 = vld [vmem:[%s2 + $0x48] sm:$0xff]
  %v727 = vld [vmem:[%s2 + $0x50] sm:$0xff]
  %v728 = vld [vmem:[%s2 + $0x58] sm:$0xff]
  %v729 = vld [vmem:[%s2 + $0x60] sm:$0xff]
  %v730 = vld [vmem:[%s2 + $0x68] sm:$0xff]
  %v731 = vld [vmem:[%s2 + $0x70] sm:$0xff]
  %v732 = vld [vmem:[%s2 + $0x78] sm:$0xff]
  %v733 = vld [vmem:[%s2 + $0x80] sm:$0xff]
  %v734 = vld [vmem:[%s2 + $0x88] sm:$0xff]
  %v735 = vld [vmem:[%s2 + $0x90] sm:$0xff]
  %v736 = vld [vmem:[%s2 + $0x98] sm:$0xff]
  %v737 = vld [vmem:[%s2 + $0xa0] sm:$0xff]
  %v738 = vld [vmem:[%s2 + $0xa8] sm:$0xff]
  %v739 = vld [vmem:[%s2 + $0xb0] sm:$0xff]
  %v740 = vld [vmem:[%s2 + $0xb8] sm:$0xff]
  %v741 = vld [vmem:[%s2 + $0xc0] sm:$0xff]
  %v742 = vld [vmem:[%s2 + $0xc8] sm:$0xff]
  %v743 = vld [vmem:[%s2 + $0xd0] sm:$0xff]
  %v744 = vld [vmem:[%s2 + $0xd8] sm:$0xff]
  %v745 = vld [vmem:[%s2 + $0xe0] sm:$0xff]
  %v746 = vld [vmem:[%s2 + $0xe8] sm:$0xff]
  %v747 = vld [vmem:[%s2 + $0xf0] sm:$0xff]
  %v748 = vld [vmem:[%s2 + $0xf8] sm:$0xff]
  %v749 = vld [vmem:[%s2 + $0x100] sm:$0xff]
  %v750 = vld [vmem:[%s2 + $0x108] sm:$0xff]
  %v751 = vld [vmem:[%s2 + $0x110] sm:$0xff]
  %v752 = vld [vmem:[%s2 + $0x118] sm:$0xff]
  %v753 = vld [vmem:[%s2 + $0x120] sm:$0xff]
  %v754 = vld [vmem:[%s2 + $0x128] sm:$0xff]
  %v755 = vld [vmem:[%s2 + $0x130] sm:$0xff]
  %v756 = vld [vmem:[%s2 + $0x138] sm:$0xff]
  %v757 = vld [vmem:[%s2 + $0x140] sm:$0xff]
  %v758 = vld [vmem:[%s2 + $0x148] sm:$0xff]
  %v759 = vld [vmem:[%s2 + $0x150] sm:$0xff]
  %v760 = vld [vmem:[%s2 + $0x158] sm:$0xff]
  %v761 = vld [vmem:[%s2 + $0x160] sm:$0xff]
  %v762 = vld [vmem:[%s2 + $0x168] sm:$0xff]
  %v763 = vld [vmem:[%s2 + $0x170] sm:$0xff]
  %v764 = vld [vmem:[%s2 + $0x178] sm:$0xff]
  %v765 = vld [vmem:[%s2 + $0x180] sm:$0xff]
  %v766 = vld [vmem:[%s2 + $0x188] sm:$0xff]
  %v767 = vld [vmem:[%s2 + $0x190] sm:$0xff]
  %v768 = vld [vmem:[%s2 + $0x198] sm:$0xff]
  %v769 = vld [vmem:[%s2 + $0x1a0] sm:$0xff]
  %v770 = vld [vmem:[%s2 + $0x1a8] sm:$0xff]
  %v771 = vld [vmem:[%s2 + $0x1b0] sm:$0xff]
  %v772 = vld [vmem:[%s2 + $0x1b8] sm:$0xff]
  %v773 = vld [vmem:[%s2 + $0x1c0] sm:$0xff]
  %v774 = vld [vmem:[%s2 + $0x1c8] sm:$0xff]
  %v775 = vld [vmem:[%s2 + $0x1d0] sm:$0xff]
  %v776 = vld [vmem:[%s2 + $0x1d8] sm:$0xff]
  %v777 = vld [vmem:[%s2 + $0x1e0] sm:$0xff]
  %v778 = vld [vmem:[%s2 + $0x1e8] sm:$0xff]
  %v779 = vld [vmem:[%s2 + $0x1f0] sm:$0xff]
  %v780 = vld [vmem:[%s2 + $0x1f8] sm:$0xff]
  %781 = vmatpush.msra.mxu0 %v777
  %782 = vmatpush.msra.mxu0 %v773
  %783 = vmatpush.msra.mxu0 %v769
  %784 = vmatpush.msra.mxu0 %v765
  %785 = vmatpush.msra.mxu0 %v761
  %786 = vmatpush.msra.mxu0 %v757
  %787 = vmatpush.msra.mxu0 %v753
  %788 = vmatpush.msra.mxu0 %v749
  %789 = vmatpush.msra.mxu0 %v745
  %790 = vmatpush.msra.mxu0 %v741
  %791 = vmatpush.msra.mxu0 %v737
  %792 = vmatpush.msra.mxu0 %v733
  %793 = vmatpush.msra.mxu0 %v729
  %794 = vmatpush.msra.mxu0 %v725
  %795 = vmatpush.msra.mxu0 %v721
  %796 = vmatpush.msra.mxu0 %v717
  %797 = vmatmul.f32.gmra.mxu0 %v709
  %v798 = vpop.f32.mrf.mxu0
  %v799 = vadd.f32 0.0, %v798
  %800 = vdwg.mxu0
  %801 = vmatpush.msra.mxu0 %v778
  %802 = vmatpush.msra.mxu0 %v774
  %803 = vmatpush.msra.mxu0 %v770
  %804 = vmatpush.msra.mxu0 %v766
  %805 = vmatpush.msra.mxu0 %v762
  %806 = vmatpush.msra.mxu0 %v758
  %807 = vmatpush.msra.mxu0 %v754
  %808 = vmatpush.msra.mxu0 %v750
  %809 = vmatpush.msra.mxu0 %v746
  %810 = vmatpush.msra.mxu0 %v742
  %811 = vmatpush.msra.mxu0 %v738
  %812 = vmatpush.msra.mxu0 %v734
  %813 = vmatpush.msra.mxu0 %v730
  %814 = vmatpush.msra.mxu0 %v726
  %815 = vmatpush.msra.mxu0 %v722
  %816 = vmatpush.msra.mxu0 %v718
  %817 = vmatmul.f32.gmra.mxu0 %v709
  %v818 = vpop.f32.mrf.mxu0
  %v819 = vadd.f32 0.0, %v818
  %820 = vdwg.mxu0
  %821 = vmatpush.msra.mxu0 %v779
  %822 = vmatpush.msra.mxu0 %v775
  %823 = vmatpush.msra.mxu0 %v771
  %824 = vmatpush.msra.mxu0 %v767
  %825 = vmatpush.msra.mxu0 %v763
  %826 = vmatpush.msra.mxu0 %v759
  %827 = vmatpush.msra.mxu0 %v755
  %828 = vmatpush.msra.mxu0 %v751
  %829 = vmatpush.msra.mxu0 %v747
  %830 = vmatpush.msra.mxu0 %v743
  %831 = vmatpush.msra.mxu0 %v739
  %832 = vmatpush.msra.mxu0 %v735
  %833 = vmatpush.msra.mxu0 %v731
  %834 = vmatpush.msra.mxu0 %v727
  %835 = vmatpush.msra.mxu0 %v723
  %836 = vmatpush.msra.mxu0 %v719
  %837 = vmatmul.f32.gmra.mxu0 %v709
  %v838 = vpop.f32.mrf.mxu0
  %v839 = vadd.f32 0.0, %v838
  %840 = vdwg.mxu0
  %841 = vmatpush.msra.mxu0 %v780
  %842 = vmatpush.msra.mxu0 %v776
  %843 = vmatpush.msra.mxu0 %v772
  %844 = vmatpush.msra.mxu0 %v768
  %845 = vmatpush.msra.mxu0 %v764
  %846 = vmatpush.msra.mxu0 %v760
  %847 = vmatpush.msra.mxu0 %v756
  %848 = vmatpush.msra.mxu0 %v752
  %849 = vmatpush.msra.mxu0 %v748
  %850 = vmatpush.msra.mxu0 %v744
  %851 = vmatpush.msra.mxu0 %v740
  %852 = vmatpush.msra.mxu0 %v736
  %853 = vmatpush.msra.mxu0 %v732
  %854 = vmatpush.msra.mxu0 %v728
  %855 = vmatpush.msra.mxu0 %v724
  %856 = vmatpush.msra.mxu0 %v720
  %857 = vmatmul.f32.gmra.mxu0 %v709
  %v858 = vpop.f32.mrf.mxu0
  %v859 = vadd.f32 0.0, %v858
  %860 = vdwg.mxu0
  %v861 = vadd.f32 %v713, %v799
  %v862 = vadd.f32 %v714, %v819
  %v863 = vadd.f32 %v715, %v839
  %v864 = vadd.f32 %v716, %v859
  %v865 = vxor.u32 %v861, 2147483648
  %v866 = vmul.f32 %v865, 1.442695
  %v867 = vpow.pop %v866
  %v868 = vadd.f32 %v867, 1.0
  %v869 = vrcp.pop %v868
  %v870 = vmul.f32 %v868, %v869
  %v871 = vsub.f32 1.0, %v870
  %v872 = vmul.f32 %v869, %v871
  %v873 = vadd.f32 %v869, %v872
  %vm874 = vweird.f32 %v868
  %vm875 = vweird.f32 %v869
  %vm876 = vmor %vm874, %vm875
  %v877 = vsel %vm876, %v869, %v873
  %v878 = vand.u32 2147483647, %v868
  %vm879 = vcmp.eq.f32.partialorder %v878, 8.507059e+37
  %v880 = vand.u32 %v868, 2147483648
  %v881 = vor.u32 1.1754944e-38, %v880
  %v882 = vsel %vm879, %v881, %v877
  %v883 = vmul.f32 1.0, %v882
  %v884 = vxor.u32 %v862, 2147483648
  %v885 = vmul.f32 %v884, 1.442695
  %v886 = vpow.pop %v885
  %v887 = vadd.f32 %v886, 1.0
  %v888 = vrcp.pop %v887
  %v889 = vmul.f32 %v887, %v888
  %v890 = vsub.f32 1.0, %v889
  %v891 = vmul.f32 %v888, %v890
  %v892 = vadd.f32 %v888, %v891
  %vm893 = vweird.f32 %v887
  %vm894 = vweird.f32 %v888
  %vm895 = vmor %vm893, %vm894
  %v896 = vsel %vm895, %v888, %v892
  %v897 = vand.u32 2147483647, %v887
  %vm898 = vcmp.eq.f32.partialorder %v897, 8.507059e+37
  %v899 = vand.u32 %v887, 2147483648
  %v900 = vor.u32 1.1754944e-38, %v899
  %v901 = vsel %vm898, %v900, %v896
  %v902 = vmul.f32 1.0, %v901
  %v903 = vtanh.pop %v863
  %v904 = vxor.u32 %v864, 2147483648
  %v905 = vmul.f32 %v904, 1.442695
  %v906 = vpow.pop %v905
  %v907 = vadd.f32 %v906, 1.0
  %v908 = vrcp.pop %v907
  %v909 = vmul.f32 %v907, %v908
  %v910 = vsub.f32 1.0, %v909
  %v911 = vmul.f32 %v908, %v910
  %v912 = vadd.f32 %v908, %v911
  %vm913 = vweird.f32 %v907
  %vm914 = vweird.f32 %v908
  %vm915 = vmor %vm913, %vm914
  %v916 = vsel %vm915, %v908, %v912
  %v917 = vand.u32 2147483647, %v907
  %vm918 = vcmp.eq.f32.partialorder %v917, 8.507059e+37
  %v919 = vand.u32 %v907, 2147483648
  %v920 = vor.u32 1.1754944e-38, %v919
  %v921 = vsel %vm918, %v920, %v916
  %v922 = vmul.f32 1.0, %v921
  %v923 = vmul.f32 %v902, %v707
  %v924 = vmul.f32 %v883, %v903
  %v925 = vadd.f32 %v923, %v924
  %v926 = vtanh.pop %v925
  %v927 = vmul.f32 %v922, %v926
  %s928 = scalar_lea.vmem [#allocation3], 16
  %929 = vst [vmem:[%s928] sm:$0xff] %v927
  %s930 = scalar_lea.vmem [#allocation2], 96
  %v931 = vld [vmem:[%s930] sm:$0xff]
  %v932 = vld [vmem:[%s930 + $0x8] sm:$0xff]
  %v933 = vld [vmem:[%s930 + $0x10] sm:$0xff]
  %v934 = vld [vmem:[%s930 + $0x18] sm:$0xff]
  %v935 = vld [vmem:[%s2] sm:$0xff]
  %v936 = vld [vmem:[%s2 + $0x8] sm:$0xff]
  %v937 = vld [vmem:[%s2 + $0x10] sm:$0xff]
  %v938 = vld [vmem:[%s2 + $0x18] sm:$0xff]
  %v939 = vld [vmem:[%s2 + $0x20] sm:$0xff]
  %v940 = vld [vmem:[%s2 + $0x28] sm:$0xff]
  %v941 = vld [vmem:[%s2 + $0x30] sm:$0xff]
  %v942 = vld [vmem:[%s2 + $0x38] sm:$0xff]
  %v943 = vld [vmem:[%s2 + $0x40] sm:$0xff]
  %v944 = vld [vmem:[%s2 + $0x48] sm:$0xff]
  %v945 = vld [vmem:[%s2 + $0x50] sm:$0xff]
  %v946 = vld [vmem:[%s2 + $0x58] sm:$0xff]
  %v947 = vld [vmem:[%s2 + $0x60] sm:$0xff]
  %v948 = vld [vmem:[%s2 + $0x68] sm:$0xff]
  %v949 = vld [vmem:[%s2 + $0x70] sm:$0xff]
  %v950 = vld [vmem:[%s2 + $0x78] sm:$0xff]
  %v951 = vld [vmem:[%s2 + $0x80] sm:$0xff]
  %v952 = vld [vmem:[%s2 + $0x88] sm:$0xff]
  %v953 = vld [vmem:[%s2 + $0x90] sm:$0xff]
  %v954 = vld [vmem:[%s2 + $0x98] sm:$0xff]
  %v955 = vld [vmem:[%s2 + $0xa0] sm:$0xff]
  %v956 = vld [vmem:[%s2 + $0xa8] sm:$0xff]
  %v957 = vld [vmem:[%s2 + $0xb0] sm:$0xff]
  %v958 = vld [vmem:[%s2 + $0xb8] sm:$0xff]
  %v959 = vld [vmem:[%s2 + $0xc0] sm:$0xff]
  %v960 = vld [vmem:[%s2 + $0xc8] sm:$0xff]
  %v961 = vld [vmem:[%s2 + $0xd0] sm:$0xff]
  %v962 = vld [vmem:[%s2 + $0xd8] sm:$0xff]
  %v963 = vld [vmem:[%s2 + $0xe0] sm:$0xff]
  %v964 = vld [vmem:[%s2 + $0xe8] sm:$0xff]
  %v965 = vld [vmem:[%s2 + $0xf0] sm:$0xff]
  %v966 = vld [vmem:[%s2 + $0xf8] sm:$0xff]
  %v967 = vld [vmem:[%s2 + $0x100] sm:$0xff]
  %v968 = vld [vmem:[%s2 + $0x108] sm:$0xff]
  %v969 = vld [vmem:[%s2 + $0x110] sm:$0xff]
  %v970 = vld [vmem:[%s2 + $0x118] sm:$0xff]
  %v971 = vld [vmem:[%s2 + $0x120] sm:$0xff]
  %v972 = vld [vmem:[%s2 + $0x128] sm:$0xff]
  %v973 = vld [vmem:[%s2 + $0x130] sm:$0xff]
  %v974 = vld [vmem:[%s2 + $0x138] sm:$0xff]
  %v975 = vld [vmem:[%s2 + $0x140] sm:$0xff]
  %v976 = vld [vmem:[%s2 + $0x148] sm:$0xff]
  %v977 = vld [vmem:[%s2 + $0x150] sm:$0xff]
  %v978 = vld [vmem:[%s2 + $0x158] sm:$0xff]
  %v979 = vld [vmem:[%s2 + $0x160] sm:$0xff]
  %v980 = vld [vmem:[%s2 + $0x168] sm:$0xff]
  %v981 = vld [vmem:[%s2 + $0x170] sm:$0xff]
  %v982 = vld [vmem:[%s2 + $0x178] sm:$0xff]
  %v983 = vld [vmem:[%s2 + $0x180] sm:$0xff]
  %v984 = vld [vmem:[%s2 + $0x188] sm:$0xff]
  %v985 = vld [vmem:[%s2 + $0x190] sm:$0xff]
  %v986 = vld [vmem:[%s2 + $0x198] sm:$0xff]
  %v987 = vld [vmem:[%s2 + $0x1a0] sm:$0xff]
  %v988 = vld [vmem:[%s2 + $0x1a8] sm:$0xff]
  %v989 = vld [vmem:[%s2 + $0x1b0] sm:$0xff]
  %v990 = vld [vmem:[%s2 + $0x1b8] sm:$0xff]
  %v991 = vld [vmem:[%s2 + $0x1c0] sm:$0xff]
  %v992 = vld [vmem:[%s2 + $0x1c8] sm:$0xff]
  %v993 = vld [vmem:[%s2 + $0x1d0] sm:$0xff]
  %v994 = vld [vmem:[%s2 + $0x1d8] sm:$0xff]
  %v995 = vld [vmem:[%s2 + $0x1e0] sm:$0xff]
  %v996 = vld [vmem:[%s2 + $0x1e8] sm:$0xff]
  %v997 = vld [vmem:[%s2 + $0x1f0] sm:$0xff]
  %v998 = vld [vmem:[%s2 + $0x1f8] sm:$0xff]
  %999 = vmatpush.msra.mxu0 %v995
  %1000 = vmatpush.msra.mxu0 %v991
  %1001 = vmatpush.msra.mxu0 %v987
  %1002 = vmatpush.msra.mxu0 %v983
  %1003 = vmatpush.msra.mxu0 %v979
  %1004 = vmatpush.msra.mxu0 %v975
  %1005 = vmatpush.msra.mxu0 %v971
  %1006 = vmatpush.msra.mxu0 %v967
  %1007 = vmatpush.msra.mxu0 %v963
  %1008 = vmatpush.msra.mxu0 %v959
  %1009 = vmatpush.msra.mxu0 %v955
  %1010 = vmatpush.msra.mxu0 %v951
  %1011 = vmatpush.msra.mxu0 %v947
  %1012 = vmatpush.msra.mxu0 %v943
  %1013 = vmatpush.msra.mxu0 %v939
  %1014 = vmatpush.msra.mxu0 %v935
  %1015 = vmatmul.f32.gmra.mxu0 %v927
  %v1016 = vpop.f32.mrf.mxu0
  %v1017 = vadd.f32 0.0, %v1016
  %1018 = vdwg.mxu0
  %1019 = vmatpush.msra.mxu0 %v996
  %1020 = vmatpush.msra.mxu0 %v992
  %1021 = vmatpush.msra.mxu0 %v988
  %1022 = vmatpush.msra.mxu0 %v984
  %1023 = vmatpush.msra.mxu0 %v980
  %1024 = vmatpush.msra.mxu0 %v976
  %1025 = vmatpush.msra.mxu0 %v972
  %1026 = vmatpush.msra.mxu0 %v968
  %1027 = vmatpush.msra.mxu0 %v964
  %1028 = vmatpush.msra.mxu0 %v960
  %1029 = vmatpush.msra.mxu0 %v956
  %1030 = vmatpush.msra.mxu0 %v952
  %1031 = vmatpush.msra.mxu0 %v948
  %1032 = vmatpush.msra.mxu0 %v944
  %1033 = vmatpush.msra.mxu0 %v940
  %1034 = vmatpush.msra.mxu0 %v936
  %1035 = vmatmul.f32.gmra.mxu0 %v927
  %v1036 = vpop.f32.mrf.mxu0
  %v1037 = vadd.f32 0.0, %v1036
  %1038 = vdwg.mxu0
  %1039 = vmatpush.msra.mxu0 %v997
  %1040 = vmatpush.msra.mxu0 %v993
  %1041 = vmatpush.msra.mxu0 %v989
  %1042 = vmatpush.msra.mxu0 %v985
  %1043 = vmatpush.msra.mxu0 %v981
  %1044 = vmatpush.msra.mxu0 %v977
  %1045 = vmatpush.msra.mxu0 %v973
  %1046 = vmatpush.msra.mxu0 %v969
  %1047 = vmatpush.msra.mxu0 %v965
  %1048 = vmatpush.msra.mxu0 %v961
  %1049 = vmatpush.msra.mxu0 %v957
  %1050 = vmatpush.msra.mxu0 %v953
  %1051 = vmatpush.msra.mxu0 %v949
  %1052 = vmatpush.msra.mxu0 %v945
  %1053 = vmatpush.msra.mxu0 %v941
  %1054 = vmatpush.msra.mxu0 %v937
  %1055 = vmatmul.f32.gmra.mxu0 %v927
  %v1056 = vpop.f32.mrf.mxu0
  %v1057 = vadd.f32 0.0, %v1056
  %1058 = vdwg.mxu0
  %1059 = vmatpush.msra.mxu0 %v998
  %1060 = vmatpush.msra.mxu0 %v994
  %1061 = vmatpush.msra.mxu0 %v990
  %1062 = vmatpush.msra.mxu0 %v986
  %1063 = vmatpush.msra.mxu0 %v982
  %1064 = vmatpush.msra.mxu0 %v978
  %1065 = vmatpush.msra.mxu0 %v974
  %1066 = vmatpush.msra.mxu0 %v970
  %1067 = vmatpush.msra.mxu0 %v966
  %1068 = vmatpush.msra.mxu0 %v962
  %1069 = vmatpush.msra.mxu0 %v958
  %1070 = vmatpush.msra.mxu0 %v954
  %1071 = vmatpush.msra.mxu0 %v950
  %1072 = vmatpush.msra.mxu0 %v946
  %1073 = vmatpush.msra.mxu0 %v942
  %1074 = vmatpush.msra.mxu0 %v938
  %1075 = vmatmul.f32.gmra.mxu0 %v927
  %v1076 = vpop.f32.mrf.mxu0
  %v1077 = vadd.f32 0.0, %v1076
  %1078 = vdwg.mxu0
  %v1079 = vadd.f32 %v931, %v1017
  %v1080 = vadd.f32 %v932, %v1037
  %v1081 = vadd.f32 %v933, %v1057
  %v1082 = vadd.f32 %v934, %v1077
  %v1083 = vxor.u32 %v1079, 2147483648
  %v1084 = vmul.f32 %v1083, 1.442695
  %v1085 = vpow.pop %v1084
  %v1086 = vadd.f32 %v1085, 1.0
  %v1087 = vrcp.pop %v1086
  %v1088 = vmul.f32 %v1086, %v1087
  %v1089 = vsub.f32 1.0, %v1088
  %v1090 = vmul.f32 %v1087, %v1089
  %v1091 = vadd.f32 %v1087, %v1090
  %vm1092 = vweird.f32 %v1086
  %vm1093 = vweird.f32 %v1087
  %vm1094 = vmor %vm1092, %vm1093
  %v1095 = vsel %vm1094, %v1087, %v1091
  %v1096 = vand.u32 2147483647, %v1086
  %vm1097 = vcmp.eq.f32.partialorder %v1096, 8.507059e+37
  %v1098 = vand.u32 %v1086, 2147483648
  %v1099 = vor.u32 1.1754944e-38, %v1098
  %v1100 = vsel %vm1097, %v1099, %v1095
  %v1101 = vmul.f32 1.0, %v1100
  %v1102 = vxor.u32 %v1080, 2147483648
  %v1103 = vmul.f32 %v1102, 1.442695
  %v1104 = vpow.pop %v1103
  %v1105 = vadd.f32 %v1104, 1.0
  %v1106 = vrcp.pop %v1105
  %v1107 = vmul.f32 %v1105, %v1106
  %v1108 = vsub.f32 1.0, %v1107
  %v1109 = vmul.f32 %v1106, %v1108
  %v1110 = vadd.f32 %v1106, %v1109
  %vm1111 = vweird.f32 %v1105
  %vm1112 = vweird.f32 %v1106
  %vm1113 = vmor %vm1111, %vm1112
  %v1114 = vsel %vm1113, %v1106, %v1110
  %v1115 = vand.u32 2147483647, %v1105
  %vm1116 = vcmp.eq.f32.partialorder %v1115, 8.507059e+37
  %v1117 = vand.u32 %v1105, 2147483648
  %v1118 = vor.u32 1.1754944e-38, %v1117
  %v1119 = vsel %vm1116, %v1118, %v1114
  %v1120 = vmul.f32 1.0, %v1119
  %v1121 = vtanh.pop %v1081
  %v1122 = vxor.u32 %v1082, 2147483648
  %v1123 = vmul.f32 %v1122, 1.442695
  %v1124 = vpow.pop %v1123
  %v1125 = vadd.f32 %v1124, 1.0
  %v1126 = vrcp.pop %v1125
  %v1127 = vmul.f32 %v1125, %v1126
  %v1128 = vsub.f32 1.0, %v1127
  %v1129 = vmul.f32 %v1126, %v1128
  %v1130 = vadd.f32 %v1126, %v1129
  %vm1131 = vweird.f32 %v1125
  %vm1132 = vweird.f32 %v1126
  %vm1133 = vmor %vm1131, %vm1132
  %v1134 = vsel %vm1133, %v1126, %v1130
  %v1135 = vand.u32 2147483647, %v1125
  %vm1136 = vcmp.eq.f32.partialorder %v1135, 8.507059e+37
  %v1137 = vand.u32 %v1125, 2147483648
  %v1138 = vor.u32 1.1754944e-38, %v1137
  %v1139 = vsel %vm1136, %v1138, %v1134
  %v1140 = vmul.f32 1.0, %v1139
  %v1141 = vmul.f32 %v1120, %v925
  %v1142 = vmul.f32 %v1101, %v1121
  %v1143 = vadd.f32 %v1141, %v1142
  %v1144 = vtanh.pop %v1143
  %v1145 = vmul.f32 %v1140, %v1144
  %s1146 = scalar_lea.vmem [#allocation3], 24
  %1147 = vst [vmem:[%s1146] sm:$0xff] %v1145
  %s1148 = scalar_lea.vmem [#allocation2], 128
  %v1149 = vld [vmem:[%s1148] sm:$0xff]
  %v1150 = vld [vmem:[%s1148 + $0x8] sm:$0xff]
  %v1151 = vld [vmem:[%s1148 + $0x10] sm:$0xff]
  %v1152 = vld [vmem:[%s1148 + $0x18] sm:$0xff]
  %v1153 = vld [vmem:[%s2] sm:$0xff]
  %v1154 = vld [vmem:[%s2 + $0x8] sm:$0xff]
  %v1155 = vld [vmem:[%s2 + $0x10] sm:$0xff]
  %v1156 = vld [vmem:[%s2 + $0x18] sm:$0xff]
  %v1157 = vld [vmem:[%s2 + $0x20] sm:$0xff]
  %v1158 = vld [vmem:[%s2 + $0x28] sm:$0xff]
  %v1159 = vld [vmem:[%s2 + $0x30] sm:$0xff]
  %v1160 = vld [vmem:[%s2 + $0x38] sm:$0xff]
  %v1161 = vld [vmem:[%s2 + $0x40] sm:$0xff]
  %v1162 = vld [vmem:[%s2 + $0x48] sm:$0xff]
  %v1163 = vld [vmem:[%s2 + $0x50] sm:$0xff]
  %v1164 = vld [vmem:[%s2 + $0x58] sm:$0xff]
  %v1165 = vld [vmem:[%s2 + $0x60] sm:$0xff]
  %v1166 = vld [vmem:[%s2 + $0x68] sm:$0xff]
  %v1167 = vld [vmem:[%s2 + $0x70] sm:$0xff]
  %v1168 = vld [vmem:[%s2 + $0x78] sm:$0xff]
  %v1169 = vld [vmem:[%s2 + $0x80] sm:$0xff]
  %v1170 = vld [vmem:[%s2 + $0x88] sm:$0xff]
  %v1171 = vld [vmem:[%s2 + $0x90] sm:$0xff]
  %v1172 = vld [vmem:[%s2 + $0x98] sm:$0xff]
  %v1173 = vld [vmem:[%s2 + $0xa0] sm:$0xff]
  %v1174 = vld [vmem:[%s2 + $0xa8] sm:$0xff]
  %v1175 = vld [vmem:[%s2 + $0xb0] sm:$0xff]
  %v1176 = vld [vmem:[%s2 + $0xb8] sm:$0xff]
  %v1177 = vld [vmem:[%s2 + $0xc0] sm:$0xff]
  %v1178 = vld [vmem:[%s2 + $0xc8] sm:$0xff]
  %v1179 = vld [vmem:[%s2 + $0xd0] sm:$0xff]
  %v1180 = vld [vmem:[%s2 + $0xd8] sm:$0xff]
  %v1181 = vld [vmem:[%s2 + $0xe0] sm:$0xff]
  %v1182 = vld [vmem:[%s2 + $0xe8] sm:$0xff]
  %v1183 = vld [vmem:[%s2 + $0xf0] sm:$0xff]
  %v1184 = vld [vmem:[%s2 + $0xf8] sm:$0xff]
  %v1185 = vld [vmem:[%s2 + $0x100] sm:$0xff]
  %v1186 = vld [vmem:[%s2 + $0x108] sm:$0xff]
  %v1187 = vld [vmem:[%s2 + $0x110] sm:$0xff]
  %v1188 = vld [vmem:[%s2 + $0x118] sm:$0xff]
  %v1189 = vld [vmem:[%s2 + $0x120] sm:$0xff]
  %v1190 = vld [vmem:[%s2 + $0x128] sm:$0xff]
  %v1191 = vld [vmem:[%s2 + $0x130] sm:$0xff]
  %v1192 = vld [vmem:[%s2 + $0x138] sm:$0xff]
  %v1193 = vld [vmem:[%s2 + $0x140] sm:$0xff]
  %v1194 = vld [vmem:[%s2 + $0x148] sm:$0xff]
  %v1195 = vld [vmem:[%s2 + $0x150] sm:$0xff]
  %v1196 = vld [vmem:[%s2 + $0x158] sm:$0xff]
  %v1197 = vld [vmem:[%s2 + $0x160] sm:$0xff]
  %v1198 = vld [vmem:[%s2 + $0x168] sm:$0xff]
  %v1199 = vld [vmem:[%s2 + $0x170] sm:$0xff]
  %v1200 = vld [vmem:[%s2 + $0x178] sm:$0xff]
  %v1201 = vld [vmem:[%s2 + $0x180] sm:$0xff]
  %v1202 = vld [vmem:[%s2 + $0x188] sm:$0xff]
  %v1203 = vld [vmem:[%s2 + $0x190] sm:$0xff]
  %v1204 = vld [vmem:[%s2 + $0x198] sm:$0xff]
  %v1205 = vld [vmem:[%s2 + $0x1a0] sm:$0xff]
  %v1206 = vld [vmem:[%s2 + $0x1a8] sm:$0xff]
  %v1207 = vld [vmem:[%s2 + $0x1b0] sm:$0xff]
  %v1208 = vld [vmem:[%s2 + $0x1b8] sm:$0xff]
  %v1209 = vld [vmem:[%s2 + $0x1c0] sm:$0xff]
  %v1210 = vld [vmem:[%s2 + $0x1c8] sm:$0xff]
  %v1211 = vld [vmem:[%s2 + $0x1d0] sm:$0xff]
  %v1212 = vld [vmem:[%s2 + $0x1d8] sm:$0xff]
  %v1213 = vld [vmem:[%s2 + $0x1e0] sm:$0xff]
  %v1214 = vld [vmem:[%s2 + $0x1e8] sm:$0xff]
  %v1215 = vld [vmem:[%s2 + $0x1f0] sm:$0xff]
  %v1216 = vld [vmem:[%s2 + $0x1f8] sm:$0xff]
  %1217 = vmatpush.msra.mxu0 %v1213
  %1218 = vmatpush.msra.mxu0 %v1209
  %1219 = vmatpush.msra.mxu0 %v1205
  %1220 = vmatpush.msra.mxu0 %v1201
  %1221 = vmatpush.msra.mxu0 %v1197
  %1222 = vmatpush.msra.mxu0 %v1193
  %1223 = vmatpush.msra.mxu0 %v1189
  %1224 = vmatpush.msra.mxu0 %v1185
  %1225 = vmatpush.msra.mxu0 %v1181
  %1226 = vmatpush.msra.mxu0 %v1177
  %1227 = vmatpush.msra.mxu0 %v1173
  %1228 = vmatpush.msra.mxu0 %v1169
  %1229 = vmatpush.msra.mxu0 %v1165
  %1230 = vmatpush.msra.mxu0 %v1161
  %1231 = vmatpush.msra.mxu0 %v1157
  %1232 = vmatpush.msra.mxu0 %v1153
  %1233 = vmatmul.f32.gmra.mxu0 %v1145
  %v1234 = vpop.f32.mrf.mxu0
  %v1235 = vadd.f32 0.0, %v1234
  %1236 = vdwg.mxu0
  %1237 = vmatpush.msra.mxu0 %v1214
  %1238 = vmatpush.msra.mxu0 %v1210
  %1239 = vmatpush.msra.mxu0 %v1206
  %1240 = vmatpush.msra.mxu0 %v1202
  %1241 = vmatpush.msra.mxu0 %v1198
  %1242 = vmatpush.msra.mxu0 %v1194
  %1243 = vmatpush.msra.mxu0 %v1190
  %1244 = vmatpush.msra.mxu0 %v1186
  %1245 = vmatpush.msra.mxu0 %v1182
  %1246 = vmatpush.msra.mxu0 %v1178
  %1247 = vmatpush.msra.mxu0 %v1174
  %1248 = vmatpush.msra.mxu0 %v1170
  %1249 = vmatpush.msra.mxu0 %v1166
  %1250 = vmatpush.msra.mxu0 %v1162
  %1251 = vmatpush.msra.mxu0 %v1158
  %1252 = vmatpush.msra.mxu0 %v1154
  %1253 = vmatmul.f32.gmra.mxu0 %v1145
  %v1254 = vpop.f32.mrf.mxu0
  %v1255 = vadd.f32 0.0, %v1254
  %1256 = vdwg.mxu0
  %1257 = vmatpush.msra.mxu0 %v1215
  %1258 = vmatpush.msra.mxu0 %v1211
  %1259 = vmatpush.msra.mxu0 %v1207
  %1260 = vmatpush.msra.mxu0 %v1203
  %1261 = vmatpush.msra.mxu0 %v1199
  %1262 = vmatpush.msra.mxu0 %v1195
  %1263 = vmatpush.msra.mxu0 %v1191
  %1264 = vmatpush.msra.mxu0 %v1187
  %1265 = vmatpush.msra.mxu0 %v1183
  %1266 = vmatpush.msra.mxu0 %v1179
  %1267 = vmatpush.msra.mxu0 %v1175
  %1268 = vmatpush.msra.mxu0 %v1171
  %1269 = vmatpush.msra.mxu0 %v1167
  %1270 = vmatpush.msra.mxu0 %v1163
  %1271 = vmatpush.msra.mxu0 %v1159
  %1272 = vmatpush.msra.mxu0 %v1155
  %1273 = vmatmul.f32.gmra.mxu0 %v1145
  %v1274 = vpop.f32.mrf.mxu0
  %v1275 = vadd.f32 0.0, %v1274
  %1276 = vdwg.mxu0
  %1277 = vmatpush.msra.mxu0 %v1216
  %1278 = vmatpush.msra.mxu0 %v1212
  %1279 = vmatpush.msra.mxu0 %v1208
  %1280 = vmatpush.msra.mxu0 %v1204
  %1281 = vmatpush.msra.mxu0 %v1200
  %1282 = vmatpush.msra.mxu0 %v1196
  %1283 = vmatpush.msra.mxu0 %v1192
  %1284 = vmatpush.msra.mxu0 %v1188
  %1285 = vmatpush.msra.mxu0 %v1184
  %1286 = vmatpush.msra.mxu0 %v1180
  %1287 = vmatpush.msra.mxu0 %v1176
  %1288 = vmatpush.msra.mxu0 %v1172
  %1289 = vmatpush.msra.mxu0 %v1168
  %1290 = vmatpush.msra.mxu0 %v1164
  %1291 = vmatpush.msra.mxu0 %v1160
  %1292 = vmatpush.msra.mxu0 %v1156
  %1293 = vmatmul.f32.gmra.mxu0 %v1145
  %v1294 = vpop.f32.mrf.mxu0
  %v1295 = vadd.f32 0.0, %v1294
  %1296 = vdwg.mxu0
  %v1297 = vadd.f32 %v1149, %v1235
  %v1298 = vadd.f32 %v1150, %v1255
  %v1299 = vadd.f32 %v1151, %v1275
  %v1300 = vadd.f32 %v1152, %v1295
  %v1301 = vxor.u32 %v1297, 2147483648
  %v1302 = vmul.f32 %v1301, 1.442695
  %v1303 = vpow.pop %v1302
  %v1304 = vadd.f32 %v1303, 1.0
  %v1305 = vrcp.pop %v1304
  %v1306 = vmul.f32 %v1304, %v1305
  %v1307 = vsub.f32 1.0, %v1306
  %v1308 = vmul.f32 %v1305, %v1307
  %v1309 = vadd.f32 %v1305, %v1308
  %vm1310 = vweird.f32 %v1304
  %vm1311 = vweird.f32 %v1305
  %vm1312 = vmor %vm1310, %vm1311
  %v1313 = vsel %vm1312, %v1305, %v1309
  %v1314 = vand.u32 2147483647, %v1304
  %vm1315 = vcmp.eq.f32.partialorder %v1314, 8.507059e+37
  %v1316 = vand.u32 %v1304, 2147483648
  %v1317 = vor.u32 1.1754944e-38, %v1316
  %v1318 = vsel %vm1315, %v1317, %v1313
  %v1319 = vmul.f32 1.0, %v1318
  %v1320 = vxor.u32 %v1298, 2147483648
  %v1321 = vmul.f32 %v1320, 1.442695
  %v1322 = vpow.pop %v1321
  %v1323 = vadd.f32 %v1322, 1.0
  %v1324 = vrcp.pop %v1323
  %v1325 = vmul.f32 %v1323, %v1324
  %v1326 = vsub.f32 1.0, %v1325
  %v1327 = vmul.f32 %v1324, %v1326
  %v1328 = vadd.f32 %v1324, %v1327
  %vm1329 = vweird.f32 %v1323
  %vm1330 = vweird.f32 %v1324
  %vm1331 = vmor %vm1329, %vm1330
  %v1332 = vsel %vm1331, %v1324, %v1328
  %v1333 = vand.u32 2147483647, %v1323
  %vm1334 = vcmp.eq.f32.partialorder %v1333, 8.507059e+37
  %v1335 = vand.u32 %v1323, 2147483648
  %v1336 = vor.u32 1.1754944e-38, %v1335
  %v1337 = vsel %vm1334, %v1336, %v1332
  %v1338 = vmul.f32 1.0, %v1337
  %v1339 = vtanh.pop %v1299
  %v1340 = vxor.u32 %v1300, 2147483648
  %v1341 = vmul.f32 %v1340, 1.442695
  %v1342 = vpow.pop %v1341
  %v1343 = vadd.f32 %v1342, 1.0
  %v1344 = vrcp.pop %v1343
  %v1345 = vmul.f32 %v1343, %v1344
  %v1346 = vsub.f32 1.0, %v1345
  %v1347 = vmul.f32 %v1344, %v1346
  %v1348 = vadd.f32 %v1344, %v1347
  %vm1349 = vweird.f32 %v1343
  %vm1350 = vweird.f32 %v1344
  %vm1351 = vmor %vm1349, %vm1350
  %v1352 = vsel %vm1351, %v1344, %v1348
  %v1353 = vand.u32 2147483647, %v1343
  %vm1354 = vcmp.eq.f32.partialorder %v1353, 8.507059e+37
  %v1355 = vand.u32 %v1343, 2147483648
  %v1356 = vor.u32 1.1754944e-38, %v1355
  %v1357 = vsel %vm1354, %v1356, %v1352
  %v1358 = vmul.f32 1.0, %v1357
  %v1359 = vmul.f32 %v1338, %v1143
  %v1360 = vmul.f32 %v1319, %v1339
  %v1361 = vadd.f32 %v1359, %v1360
  %v1362 = vtanh.pop %v1361
  %v1363 = vmul.f32 %v1358, %v1362
  %s1364 = scalar_lea.vmem [#allocation3], 32
  %1365 = vst [vmem:[%s1364] sm:$0xff] %v1363
  %s1366 = scalar_lea.vmem [#allocation2], 160
  %v1367 = vld [vmem:[%s1366] sm:$0xff]
  %v1368 = vld [vmem:[%s1366 + $0x8] sm:$0xff]
  %v1369 = vld [vmem:[%s1366 + $0x10] sm:$0xff]
  %v1370 = vld [vmem:[%s1366 + $0x18] sm:$0xff]
  %v1371 = vld [vmem:[%s2] sm:$0xff]
  %v1372 = vld [vmem:[%s2 + $0x8] sm:$0xff]
  %v1373 = vld [vmem:[%s2 + $0x10] sm:$0xff]
  %v1374 = vld [vmem:[%s2 + $0x18] sm:$0xff]
  %v1375 = vld [vmem:[%s2 + $0x20] sm:$0xff]
  %v1376 = vld [vmem:[%s2 + $0x28] sm:$0xff]
  %v1377 = vld [vmem:[%s2 + $0x30] sm:$0xff]
  %v1378 = vld [vmem:[%s2 + $0x38] sm:$0xff]
  %v1379 = vld [vmem:[%s2 + $0x40] sm:$0xff]
  %v1380 = vld [vmem:[%s2 + $0x48] sm:$0xff]
  %v1381 = vld [vmem:[%s2 + $0x50] sm:$0xff]
  %v1382 = vld [vmem:[%s2 + $0x58] sm:$0xff]
  %v1383 = vld [vmem:[%s2 + $0x60] sm:$0xff]
  %v1384 = vld [vmem:[%s2 + $0x68] sm:$0xff]
  %v1385 = vld [vmem:[%s2 + $0x70] sm:$0xff]
  %v1386 = vld [vmem:[%s2 + $0x78] sm:$0xff]
  %v1387 = vld [vmem:[%s2 + $0x80] sm:$0xff]
  %v1388 = vld [vmem:[%s2 + $0x88] sm:$0xff]
  %v1389 = vld [vmem:[%s2 + $0x90] sm:$0xff]
  %v1390 = vld [vmem:[%s2 + $0x98] sm:$0xff]
  %v1391 = vld [vmem:[%s2 + $0xa0] sm:$0xff]
  %v1392 = vld [vmem:[%s2 + $0xa8] sm:$0xff]
  %v1393 = vld [vmem:[%s2 + $0xb0] sm:$0xff]
  %v1394 = vld [vmem:[%s2 + $0xb8] sm:$0xff]
  %v1395 = vld [vmem:[%s2 + $0xc0] sm:$0xff]
  %v1396 = vld [vmem:[%s2 + $0xc8] sm:$0xff]
  %v1397 = vld [vmem:[%s2 + $0xd0] sm:$0xff]
  %v1398 = vld [vmem:[%s2 + $0xd8] sm:$0xff]
  %v1399 = vld [vmem:[%s2 + $0xe0] sm:$0xff]
  %v1400 = vld [vmem:[%s2 + $0xe8] sm:$0xff]
  %v1401 = vld [vmem:[%s2 + $0xf0] sm:$0xff]
  %v1402 = vld [vmem:[%s2 + $0xf8] sm:$0xff]
  %v1403 = vld [vmem:[%s2 + $0x100] sm:$0xff]
  %v1404 = vld [vmem:[%s2 + $0x108] sm:$0xff]
  %v1405 = vld [vmem:[%s2 + $0x110] sm:$0xff]
  %v1406 = vld [vmem:[%s2 + $0x118] sm:$0xff]
  %v1407 = vld [vmem:[%s2 + $0x120] sm:$0xff]
  %v1408 = vld [vmem:[%s2 + $0x128] sm:$0xff]
  %v1409 = vld [vmem:[%s2 + $0x130] sm:$0xff]
  %v1410 = vld [vmem:[%s2 + $0x138] sm:$0xff]
  %v1411 = vld [vmem:[%s2 + $0x140] sm:$0xff]
  %v1412 = vld [vmem:[%s2 + $0x148] sm:$0xff]
  %v1413 = vld [vmem:[%s2 + $0x150] sm:$0xff]
  %v1414 = vld [vmem:[%s2 + $0x158] sm:$0xff]
  %v1415 = vld [vmem:[%s2 + $0x160] sm:$0xff]
  %v1416 = vld [vmem:[%s2 + $0x168] sm:$0xff]
  %v1417 = vld [vmem:[%s2 + $0x170] sm:$0xff]
  %v1418 = vld [vmem:[%s2 + $0x178] sm:$0xff]
  %v1419 = vld [vmem:[%s2 + $0x180] sm:$0xff]
  %v1420 = vld [vmem:[%s2 + $0x188] sm:$0xff]
  %v1421 = vld [vmem:[%s2 + $0x190] sm:$0xff]
  %v1422 = vld [vmem:[%s2 + $0x198] sm:$0xff]
  %v1423 = vld [vmem:[%s2 + $0x1a0] sm:$0xff]
  %v1424 = vld [vmem:[%s2 + $0x1a8] sm:$0xff]
  %v1425 = vld [vmem:[%s2 + $0x1b0] sm:$0xff]
  %v1426 = vld [vmem:[%s2 + $0x1b8] sm:$0xff]
  %v1427 = vld [vmem:[%s2 + $0x1c0] sm:$0xff]
  %v1428 = vld [vmem:[%s2 + $0x1c8] sm:$0xff]
  %v1429 = vld [vmem:[%s2 + $0x1d0] sm:$0xff]
  %v1430 = vld [vmem:[%s2 + $0x1d8] sm:$0xff]
  %v1431 = vld [vmem:[%s2 + $0x1e0] sm:$0xff]
  %v1432 = vld [vmem:[%s2 + $0x1e8] sm:$0xff]
  %v1433 = vld [vmem:[%s2 + $0x1f0] sm:$0xff]
  %v1434 = vld [vmem:[%s2 + $0x1f8] sm:$0xff]
  %1435 = vmatpush.msra.mxu0 %v1431
  %1436 = vmatpush.msra.mxu0 %v1427
  %1437 = vmatpush.msra.mxu0 %v1423
  %1438 = vmatpush.msra.mxu0 %v1419
  %1439 = vmatpush.msra.mxu0 %v1415
  %1440 = vmatpush.msra.mxu0 %v1411
  %1441 = vmatpush.msra.mxu0 %v1407
  %1442 = vmatpush.msra.mxu0 %v1403
  %1443 = vmatpush.msra.mxu0 %v1399
  %1444 = vmatpush.msra.mxu0 %v1395
  %1445 = vmatpush.msra.mxu0 %v1391
  %1446 = vmatpush.msra.mxu0 %v1387
  %1447 = vmatpush.msra.mxu0 %v1383
  %1448 = vmatpush.msra.mxu0 %v1379
  %1449 = vmatpush.msra.mxu0 %v1375
  %1450 = vmatpush.msra.mxu0 %v1371
  %1451 = vmatmul.f32.gmra.mxu0 %v1363
  %v1452 = vpop.f32.mrf.mxu0
  %v1453 = vadd.f32 0.0, %v1452
  %1454 = vdwg.mxu0
  %1455 = vmatpush.msra.mxu0 %v1432
  %1456 = vmatpush.msra.mxu0 %v1428
  %1457 = vmatpush.msra.mxu0 %v1424
  %1458 = vmatpush.msra.mxu0 %v1420
  %1459 = vmatpush.msra.mxu0 %v1416
  %1460 = vmatpush.msra.mxu0 %v1412
  %1461 = vmatpush.msra.mxu0 %v1408
  %1462 = vmatpush.msra.mxu0 %v1404
  %1463 = vmatpush.msra.mxu0 %v1400
  %1464 = vmatpush.msra.mxu0 %v1396
  %1465 = vmatpush.msra.mxu0 %v1392
  %1466 = vmatpush.msra.mxu0 %v1388
  %1467 = vmatpush.msra.mxu0 %v1384
  %1468 = vmatpush.msra.mxu0 %v1380
  %1469 = vmatpush.msra.mxu0 %v1376
  %1470 = vmatpush.msra.mxu0 %v1372
  %1471 = vmatmul.f32.gmra.mxu0 %v1363
  %v1472 = vpop.f32.mrf.mxu0
  %v1473 = vadd.f32 0.0, %v1472
  %1474 = vdwg.mxu0
  %1475 = vmatpush.msra.mxu0 %v1433
  %1476 = vmatpush.msra.mxu0 %v1429
  %1477 = vmatpush.msra.mxu0 %v1425
  %1478 = vmatpush.msra.mxu0 %v1421
  %1479 = vmatpush.msra.mxu0 %v1417
  %1480 = vmatpush.msra.mxu0 %v1413
  %1481 = vmatpush.msra.mxu0 %v1409
  %1482 = vmatpush.msra.mxu0 %v1405
  %1483 = vmatpush.msra.mxu0 %v1401
  %1484 = vmatpush.msra.mxu0 %v1397
  %1485 = vmatpush.msra.mxu0 %v1393
  %1486 = vmatpush.msra.mxu0 %v1389
  %1487 = vmatpush.msra.mxu0 %v1385
  %1488 = vmatpush.msra.mxu0 %v1381
  %1489 = vmatpush.msra.mxu0 %v1377
  %1490 = vmatpush.msra.mxu0 %v1373
  %1491 = vmatmul.f32.gmra.mxu0 %v1363
  %v1492 = vpop.f32.mrf.mxu0
  %v1493 = vadd.f32 0.0, %v1492
  %1494 = vdwg.mxu0
  %1495 = vmatpush.msra.mxu0 %v1434
  %1496 = vmatpush.msra.mxu0 %v1430
  %1497 = vmatpush.msra.mxu0 %v1426
  %1498 = vmatpush.msra.mxu0 %v1422
  %1499 = vmatpush.msra.mxu0 %v1418
  %1500 = vmatpush.msra.mxu0 %v1414
  %1501 = vmatpush.msra.mxu0 %v1410
  %1502 = vmatpush.msra.mxu0 %v1406
  %1503 = vmatpush.msra.mxu0 %v1402
  %1504 = vmatpush.msra.mxu0 %v1398
  %1505 = vmatpush.msra.mxu0 %v1394
  %1506 = vmatpush.msra.mxu0 %v1390
  %1507 = vmatpush.msra.mxu0 %v1386
  %1508 = vmatpush.msra.mxu0 %v1382
  %1509 = vmatpush.msra.mxu0 %v1378
  %1510 = vmatpush.msra.mxu0 %v1374
  %1511 = vmatmul.f32.gmra.mxu0 %v1363
  %v1512 = vpop.f32.mrf.mxu0
  %v1513 = vadd.f32 0.0, %v1512
  %1514 = vdwg.mxu0
  %v1515 = vadd.f32 %v1367, %v1453
  %v1516 = vadd.f32 %v1368, %v1473
  %v1517 = vadd.f32 %v1369, %v1493
  %v1518 = vadd.f32 %v1370, %v1513
  %v1519 = vxor.u32 %v1515, 2147483648
  %v1520 = vmul.f32 %v1519, 1.442695
  %v1521 = vpow.pop %v1520
  %v1522 = vadd.f32 %v1521, 1.0
  %v1523 = vrcp.pop %v1522
  %v1524 = vmul.f32 %v1522, %v1523
  %v1525 = vsub.f32 1.0, %v1524
  %v1526 = vmul.f32 %v1523, %v1525
  %v1527 = vadd.f32 %v1523, %v1526
  %vm1528 = vweird.f32 %v1522
  %vm1529 = vweird.f32 %v1523
  %vm1530 = vmor %vm1528, %vm1529
  %v1531 = vsel %vm1530, %v1523, %v1527
  %v1532 = vand.u32 2147483647, %v1522
  %vm1533 = vcmp.eq.f32.partialorder %v1532, 8.507059e+37
  %v1534 = vand.u32 %v1522, 2147483648
  %v1535 = vor.u32 1.1754944e-38, %v1534
  %v1536 = vsel %vm1533, %v1535, %v1531
  %v1537 = vmul.f32 1.0, %v1536
  %v1538 = vxor.u32 %v1516, 2147483648
  %v1539 = vmul.f32 %v1538, 1.442695
  %v1540 = vpow.pop %v1539
  %v1541 = vadd.f32 %v1540, 1.0
  %v1542 = vrcp.pop %v1541
  %v1543 = vmul.f32 %v1541, %v1542
  %v1544 = vsub.f32 1.0, %v1543
  %v1545 = vmul.f32 %v1542, %v1544
  %v1546 = vadd.f32 %v1542, %v1545
  %vm1547 = vweird.f32 %v1541
  %vm1548 = vweird.f32 %v1542
  %vm1549 = vmor %vm1547, %vm1548
  %v1550 = vsel %vm1549, %v1542, %v1546
  %v1551 = vand.u32 2147483647, %v1541
  %vm1552 = vcmp.eq.f32.partialorder %v1551, 8.507059e+37
  %v1553 = vand.u32 %v1541, 2147483648
  %v1554 = vor.u32 1.1754944e-38, %v1553
  %v1555 = vsel %vm1552, %v1554, %v1550
  %v1556 = vmul.f32 1.0, %v1555
  %v1557 = vtanh.pop %v1517
  %v1558 = vxor.u32 %v1518, 2147483648
  %v1559 = vmul.f32 %v1558, 1.442695
  %v1560 = vpow.pop %v1559
  %v1561 = vadd.f32 %v1560, 1.0
  %v1562 = vrcp.pop %v1561
  %v1563 = vmul.f32 %v1561, %v1562
  %v1564 = vsub.f32 1.0, %v1563
  %v1565 = vmul.f32 %v1562, %v1564
  %v1566 = vadd.f32 %v1562, %v1565
  %vm1567 = vweird.f32 %v1561
  %vm1568 = vweird.f32 %v1562
  %vm1569 = vmor %vm1567, %vm1568
  %v1570 = vsel %vm1569, %v1562, %v1566
  %v1571 = vand.u32 2147483647, %v1561
  %vm1572 = vcmp.eq.f32.partialorder %v1571, 8.507059e+37
  %v1573 = vand.u32 %v1561, 2147483648
  %v1574 = vor.u32 1.1754944e-38, %v1573
  %v1575 = vsel %vm1572, %v1574, %v1570
  %v1576 = vmul.f32 1.0, %v1575
  %v1577 = vmul.f32 %v1556, %v1361
  %v1578 = vmul.f32 %v1537, %v1557
  %v1579 = vadd.f32 %v1577, %v1578
  %v1580 = vtanh.pop %v1579
  %v1581 = vmul.f32 %v1576, %v1580
  %s1582 = scalar_lea.vmem [#allocation3], 40
  %1583 = vst [vmem:[%s1582] sm:$0xff] %v1581
  %s1584 = scalar_lea.vmem [#allocation2], 192
  %v1585 = vld [vmem:[%s1584] sm:$0xff]
  %v1586 = vld [vmem:[%s1584 + $0x8] sm:$0xff]
  %v1587 = vld [vmem:[%s1584 + $0x10] sm:$0xff]
  %v1588 = vld [vmem:[%s1584 + $0x18] sm:$0xff]
  %v1589 = vld [vmem:[%s2] sm:$0xff]
  %v1590 = vld [vmem:[%s2 + $0x8] sm:$0xff]
  %v1591 = vld [vmem:[%s2 + $0x10] sm:$0xff]
  %v1592 = vld [vmem:[%s2 + $0x18] sm:$0xff]
  %v1593 = vld [vmem:[%s2 + $0x20] sm:$0xff]
  %v1594 = vld [vmem:[%s2 + $0x28] sm:$0xff]
  %v1595 = vld [vmem:[%s2 + $0x30] sm:$0xff]
  %v1596 = vld [vmem:[%s2 + $0x38] sm:$0xff]
  %v1597 = vld [vmem:[%s2 + $0x40] sm:$0xff]
  %v1598 = vld [vmem:[%s2 + $0x48] sm:$0xff]
  %v1599 = vld [vmem:[%s2 + $0x50] sm:$0xff]
  %v1600 = vld [vmem:[%s2 + $0x58] sm:$0xff]
  %v1601 = vld [vmem:[%s2 + $0x60] sm:$0xff]
  %v1602 = vld [vmem:[%s2 + $0x68] sm:$0xff]
  %v1603 = vld [vmem:[%s2 + $0x70] sm:$0xff]
  %v1604 = vld [vmem:[%s2 + $0x78] sm:$0xff]
  %v1605 = vld [vmem:[%s2 + $0x80] sm:$0xff]
  %v1606 = vld [vmem:[%s2 + $0x88] sm:$0xff]
  %v1607 = vld [vmem:[%s2 + $0x90] sm:$0xff]
  %v1608 = vld [vmem:[%s2 + $0x98] sm:$0xff]
  %v1609 = vld [vmem:[%s2 + $0xa0] sm:$0xff]
  %v1610 = vld [vmem:[%s2 + $0xa8] sm:$0xff]
  %v1611 = vld [vmem:[%s2 + $0xb0] sm:$0xff]
  %v1612 = vld [vmem:[%s2 + $0xb8] sm:$0xff]
  %v1613 = vld [vmem:[%s2 + $0xc0] sm:$0xff]
  %v1614 = vld [vmem:[%s2 + $0xc8] sm:$0xff]
  %v1615 = vld [vmem:[%s2 + $0xd0] sm:$0xff]
  %v1616 = vld [vmem:[%s2 + $0xd8] sm:$0xff]
  %v1617 = vld [vmem:[%s2 + $0xe0] sm:$0xff]
  %v1618 = vld [vmem:[%s2 + $0xe8] sm:$0xff]
  %v1619 = vld [vmem:[%s2 + $0xf0] sm:$0xff]
  %v1620 = vld [vmem:[%s2 + $0xf8] sm:$0xff]
  %v1621 = vld [vmem:[%s2 + $0x100] sm:$0xff]
  %v1622 = vld [vmem:[%s2 + $0x108] sm:$0xff]
  %v1623 = vld [vmem:[%s2 + $0x110] sm:$0xff]
  %v1624 = vld [vmem:[%s2 + $0x118] sm:$0xff]
  %v1625 = vld [vmem:[%s2 + $0x120] sm:$0xff]
  %v1626 = vld [vmem:[%s2 + $0x128] sm:$0xff]
  %v1627 = vld [vmem:[%s2 + $0x130] sm:$0xff]
  %v1628 = vld [vmem:[%s2 + $0x138] sm:$0xff]
  %v1629 = vld [vmem:[%s2 + $0x140] sm:$0xff]
  %v1630 = vld [vmem:[%s2 + $0x148] sm:$0xff]
  %v1631 = vld [vmem:[%s2 + $0x150] sm:$0xff]
  %v1632 = vld [vmem:[%s2 + $0x158] sm:$0xff]
  %v1633 = vld [vmem:[%s2 + $0x160] sm:$0xff]
  %v1634 = vld [vmem:[%s2 + $0x168] sm:$0xff]
  %v1635 = vld [vmem:[%s2 + $0x170] sm:$0xff]
  %v1636 = vld [vmem:[%s2 + $0x178] sm:$0xff]
  %v1637 = vld [vmem:[%s2 + $0x180] sm:$0xff]
  %v1638 = vld [vmem:[%s2 + $0x188] sm:$0xff]
  %v1639 = vld [vmem:[%s2 + $0x190] sm:$0xff]
  %v1640 = vld [vmem:[%s2 + $0x198] sm:$0xff]
  %v1641 = vld [vmem:[%s2 + $0x1a0] sm:$0xff]
  %v1642 = vld [vmem:[%s2 + $0x1a8] sm:$0xff]
  %v1643 = vld [vmem:[%s2 + $0x1b0] sm:$0xff]
  %v1644 = vld [vmem:[%s2 + $0x1b8] sm:$0xff]
  %v1645 = vld [vmem:[%s2 + $0x1c0] sm:$0xff]
  %v1646 = vld [vmem:[%s2 + $0x1c8] sm:$0xff]
  %v1647 = vld [vmem:[%s2 + $0x1d0] sm:$0xff]
  %v1648 = vld [vmem:[%s2 + $0x1d8] sm:$0xff]
  %v1649 = vld [vmem:[%s2 + $0x1e0] sm:$0xff]
  %v1650 = vld [vmem:[%s2 + $0x1e8] sm:$0xff]
  %v1651 = vld [vmem:[%s2 + $0x1f0] sm:$0xff]
  %v1652 = vld [vmem:[%s2 + $0x1f8] sm:$0xff]
  %1653 = vmatpush.msra.mxu0 %v1649
  %1654 = vmatpush.msra.mxu0 %v1645
  %1655 = vmatpush.msra.mxu0 %v1641
  %1656 = vmatpush.msra.mxu0 %v1637
  %1657 = vmatpush.msra.mxu0 %v1633
  %1658 = vmatpush.msra.mxu0 %v1629
  %1659 = vmatpush.msra.mxu0 %v1625
  %1660 = vmatpush.msra.mxu0 %v1621
  %1661 = vmatpush.msra.mxu0 %v1617
  %1662 = vmatpush.msra.mxu0 %v1613
  %1663 = vmatpush.msra.mxu0 %v1609
  %1664 = vmatpush.msra.mxu0 %v1605
  %1665 = vmatpush.msra.mxu0 %v1601
  %1666 = vmatpush.msra.mxu0 %v1597
  %1667 = vmatpush.msra.mxu0 %v1593
  %1668 = vmatpush.msra.mxu0 %v1589
  %1669 = vmatmul.f32.gmra.mxu0 %v1581
  %v1670 = vpop.f32.mrf.mxu0
  %v1671 = vadd.f32 0.0, %v1670
  %1672 = vdwg.mxu0
  %1673 = vmatpush.msra.mxu0 %v1650
  %1674 = vmatpush.msra.mxu0 %v1646
  %1675 = vmatpush.msra.mxu0 %v1642
  %1676 = vmatpush.msra.mxu0 %v1638
  %1677 = vmatpush.msra.mxu0 %v1634
  %1678 = vmatpush.msra.mxu0 %v1630
  %1679 = vmatpush.msra.mxu0 %v1626
  %1680 = vmatpush.msra.mxu0 %v1622
  %1681 = vmatpush.msra.mxu0 %v1618
  %1682 = vmatpush.msra.mxu0 %v1614
  %1683 = vmatpush.msra.mxu0 %v1610
  %1684 = vmatpush.msra.mxu0 %v1606
  %1685 = vmatpush.msra.mxu0 %v1602
  %1686 = vmatpush.msra.mxu0 %v1598
  %1687 = vmatpush.msra.mxu0 %v1594
  %1688 = vmatpush.msra.mxu0 %v1590
  %1689 = vmatmul.f32.gmra.mxu0 %v1581
  %v1690 = vpop.f32.mrf.mxu0
  %v1691 = vadd.f32 0.0, %v1690
  %1692 = vdwg.mxu0
  %1693 = vmatpush.msra.mxu0 %v1651
  %1694 = vmatpush.msra.mxu0 %v1647
  %1695 = vmatpush.msra.mxu0 %v1643
  %1696 = vmatpush.msra.mxu0 %v1639
  %1697 = vmatpush.msra.mxu0 %v1635
  %1698 = vmatpush.msra.mxu0 %v1631
  %1699 = vmatpush.msra.mxu0 %v1627
  %1700 = vmatpush.msra.mxu0 %v1623
  %1701 = vmatpush.msra.mxu0 %v1619
  %1702 = vmatpush.msra.mxu0 %v1615
  %1703 = vmatpush.msra.mxu0 %v1611
  %1704 = vmatpush.msra.mxu0 %v1607
  %1705 = vmatpush.msra.mxu0 %v1603
  %1706 = vmatpush.msra.mxu0 %v1599
  %1707 = vmatpush.msra.mxu0 %v1595
  %1708 = vmatpush.msra.mxu0 %v1591
  %1709 = vmatmul.f32.gmra.mxu0 %v1581
  %v1710 = vpop.f32.mrf.mxu0
  %v1711 = vadd.f32 0.0, %v1710
  %1712 = vdwg.mxu0
  %1713 = vmatpush.msra.mxu0 %v1652
  %1714 = vmatpush.msra.mxu0 %v1648
  %1715 = vmatpush.msra.mxu0 %v1644
  %1716 = vmatpush.msra.mxu0 %v1640
  %1717 = vmatpush.msra.mxu0 %v1636
  %1718 = vmatpush.msra.mxu0 %v1632
  %1719 = vmatpush.msra.mxu0 %v1628
  %1720 = vmatpush.msra.mxu0 %v1624
  %1721 = vmatpush.msra.mxu0 %v1620
  %1722 = vmatpush.msra.mxu0 %v1616
  %1723 = vmatpush.msra.mxu0 %v1612
  %1724 = vmatpush.msra.mxu0 %v1608
  %1725 = vmatpush.msra.mxu0 %v1604
  %1726 = vmatpush.msra.mxu0 %v1600
  %1727 = vmatpush.msra.mxu0 %v1596
  %1728 = vmatpush.msra.mxu0 %v1592
  %1729 = vmatmul.f32.gmra.mxu0 %v1581
  %v1730 = vpop.f32.mrf.mxu0
  %v1731 = vadd.f32 0.0, %v1730
  %1732 = vdwg.mxu0
  %v1733 = vadd.f32 %v1585, %v1671
  %v1734 = vadd.f32 %v1586, %v1691
  %v1735 = vadd.f32 %v1587, %v1711
  %v1736 = vadd.f32 %v1588, %v1731
  %v1737 = vxor.u32 %v1733, 2147483648
  %v1738 = vmul.f32 %v1737, 1.442695
  %v1739 = vpow.pop %v1738
  %v1740 = vadd.f32 %v1739, 1.0
  %v1741 = vrcp.pop %v1740
  %v1742 = vmul.f32 %v1740, %v1741
  %v1743 = vsub.f32 1.0, %v1742
  %v1744 = vmul.f32 %v1741, %v1743
  %v1745 = vadd.f32 %v1741, %v1744
  %vm1746 = vweird.f32 %v1740
  %vm1747 = vweird.f32 %v1741
  %vm1748 = vmor %vm1746, %vm1747
  %v1749 = vsel %vm1748, %v1741, %v1745
  %v1750 = vand.u32 2147483647, %v1740
  %vm1751 = vcmp.eq.f32.partialorder %v1750, 8.507059e+37
  %v1752 = vand.u32 %v1740, 2147483648
  %v1753 = vor.u32 1.1754944e-38, %v1752
  %v1754 = vsel %vm1751, %v1753, %v1749
  %v1755 = vmul.f32 1.0, %v1754
  %v1756 = vxor.u32 %v1734, 2147483648
  %v1757 = vmul.f32 %v1756, 1.442695
  %v1758 = vpow.pop %v1757
  %v1759 = vadd.f32 %v1758, 1.0
  %v1760 = vrcp.pop %v1759
  %v1761 = vmul.f32 %v1759, %v1760
  %v1762 = vsub.f32 1.0, %v1761
  %v1763 = vmul.f32 %v1760, %v1762
  %v1764 = vadd.f32 %v1760, %v1763
  %vm1765 = vweird.f32 %v1759
  %vm1766 = vweird.f32 %v1760
  %vm1767 = vmor %vm1765, %vm1766
  %v1768 = vsel %vm1767, %v1760, %v1764
  %v1769 = vand.u32 2147483647, %v1759
  %vm1770 = vcmp.eq.f32.partialorder %v1769, 8.507059e+37
  %v1771 = vand.u32 %v1759, 2147483648
  %v1772 = vor.u32 1.1754944e-38, %v1771
  %v1773 = vsel %vm1770, %v1772, %v1768
  %v1774 = vmul.f32 1.0, %v1773
  %v1775 = vtanh.pop %v1735
  %v1776 = vxor.u32 %v1736, 2147483648
  %v1777 = vmul.f32 %v1776, 1.442695
  %v1778 = vpow.pop %v1777
  %v1779 = vadd.f32 %v1778, 1.0
  %v1780 = vrcp.pop %v1779
  %v1781 = vmul.f32 %v1779, %v1780
  %v1782 = vsub.f32 1.0, %v1781
  %v1783 = vmul.f32 %v1780, %v1782
  %v1784 = vadd.f32 %v1780, %v1783
  %vm1785 = vweird.f32 %v1779
  %vm1786 = vweird.f32 %v1780
  %vm1787 = vmor %vm1785, %vm1786
  %v1788 = vsel %vm1787, %v1780, %v1784
  %v1789 = vand.u32 2147483647, %v1779
  %vm1790 = vcmp.eq.f32.partialorder %v1789, 8.507059e+37
  %v1791 = vand.u32 %v1779, 2147483648
  %v1792 = vor.u32 1.1754944e-38, %v1791
  %v1793 = vsel %vm1790, %v1792, %v1788
  %v1794 = vmul.f32 1.0, %v1793
  %v1795 = vmul.f32 %v1774, %v1579
  %v1796 = vmul.f32 %v1755, %v1775
  %v1797 = vadd.f32 %v1795, %v1796
  %v1798 = vtanh.pop %v1797
  %v1799 = vmul.f32 %v1794, %v1798
  %s1800 = scalar_lea.vmem [#allocation3], 48
  %1801 = vst [vmem:[%s1800] sm:$0xff] %v1799
  %s1802 = scalar_lea.vmem [#allocation2], 224
  %v1803 = vld [vmem:[%s1802] sm:$0xff]
  %v1804 = vld [vmem:[%s1802 + $0x8] sm:$0xff]
  %v1805 = vld [vmem:[%s1802 + $0x10] sm:$0xff]
  %v1806 = vld [vmem:[%s1802 + $0x18] sm:$0xff]
  %v1807 = vld [vmem:[%s2] sm:$0xff]
  %v1808 = vld [vmem:[%s2 + $0x8] sm:$0xff]
  %v1809 = vld [vmem:[%s2 + $0x10] sm:$0xff]
  %v1810 = vld [vmem:[%s2 + $0x18] sm:$0xff]
  %v1811 = vld [vmem:[%s2 + $0x20] sm:$0xff]
  %v1812 = vld [vmem:[%s2 + $0x28] sm:$0xff]
  %v1813 = vld [vmem:[%s2 + $0x30] sm:$0xff]
  %v1814 = vld [vmem:[%s2 + $0x38] sm:$0xff]
  %v1815 = vld [vmem:[%s2 + $0x40] sm:$0xff]
  %v1816 = vld [vmem:[%s2 + $0x48] sm:$0xff]
  %v1817 = vld [vmem:[%s2 + $0x50] sm:$0xff]
  %v1818 = vld [vmem:[%s2 + $0x58] sm:$0xff]
  %v1819 = vld [vmem:[%s2 + $0x60] sm:$0xff]
  %v1820 = vld [vmem:[%s2 + $0x68] sm:$0xff]
  %v1821 = vld [vmem:[%s2 + $0x70] sm:$0xff]
  %v1822 = vld [vmem:[%s2 + $0x78] sm:$0xff]
  %v1823 = vld [vmem:[%s2 + $0x80] sm:$0xff]
  %v1824 = vld [vmem:[%s2 + $0x88] sm:$0xff]
  %v1825 = vld [vmem:[%s2 + $0x90] sm:$0xff]
  %v1826 = vld [vmem:[%s2 + $0x98] sm:$0xff]
  %v1827 = vld [vmem:[%s2 + $0xa0] sm:$0xff]
  %v1828 = vld [vmem:[%s2 + $0xa8] sm:$0xff]
  %v1829 = vld [vmem:[%s2 + $0xb0] sm:$0xff]
  %v1830 = vld [vmem:[%s2 + $0xb8] sm:$0xff]
  %v1831 = vld [vmem:[%s2 + $0xc0] sm:$0xff]
  %v1832 = vld [vmem:[%s2 + $0xc8] sm:$0xff]
  %v1833 = vld [vmem:[%s2 + $0xd0] sm:$0xff]
  %v1834 = vld [vmem:[%s2 + $0xd8] sm:$0xff]
  %v1835 = vld [vmem:[%s2 + $0xe0] sm:$0xff]
  %v1836 = vld [vmem:[%s2 + $0xe8] sm:$0xff]
  %v1837 = vld [vmem:[%s2 + $0xf0] sm:$0xff]
  %v1838 = vld [vmem:[%s2 + $0xf8] sm:$0xff]
  %v1839 = vld [vmem:[%s2 + $0x100] sm:$0xff]
  %v1840 = vld [vmem:[%s2 + $0x108] sm:$0xff]
  %v1841 = vld [vmem:[%s2 + $0x110] sm:$0xff]
  %v1842 = vld [vmem:[%s2 + $0x118] sm:$0xff]
  %v1843 = vld [vmem:[%s2 + $0x120] sm:$0xff]
  %v1844 = vld [vmem:[%s2 + $0x128] sm:$0xff]
  %v1845 = vld [vmem:[%s2 + $0x130] sm:$0xff]
  %v1846 = vld [vmem:[%s2 + $0x138] sm:$0xff]
  %v1847 = vld [vmem:[%s2 + $0x140] sm:$0xff]
  %v1848 = vld [vmem:[%s2 + $0x148] sm:$0xff]
  %v1849 = vld [vmem:[%s2 + $0x150] sm:$0xff]
  %v1850 = vld [vmem:[%s2 + $0x158] sm:$0xff]
  %v1851 = vld [vmem:[%s2 + $0x160] sm:$0xff]
  %v1852 = vld [vmem:[%s2 + $0x168] sm:$0xff]
  %v1853 = vld [vmem:[%s2 + $0x170] sm:$0xff]
  %v1854 = vld [vmem:[%s2 + $0x178] sm:$0xff]
  %v1855 = vld [vmem:[%s2 + $0x180] sm:$0xff]
  %v1856 = vld [vmem:[%s2 + $0x188] sm:$0xff]
  %v1857 = vld [vmem:[%s2 + $0x190] sm:$0xff]
  %v1858 = vld [vmem:[%s2 + $0x198] sm:$0xff]
  %v1859 = vld [vmem:[%s2 + $0x1a0] sm:$0xff]
  %v1860 = vld [vmem:[%s2 + $0x1a8] sm:$0xff]
  %v1861 = vld [vmem:[%s2 + $0x1b0] sm:$0xff]
  %v1862 = vld [vmem:[%s2 + $0x1b8] sm:$0xff]
  %v1863 = vld [vmem:[%s2 + $0x1c0] sm:$0xff]
  %v1864 = vld [vmem:[%s2 + $0x1c8] sm:$0xff]
  %v1865 = vld [vmem:[%s2 + $0x1d0] sm:$0xff]
  %v1866 = vld [vmem:[%s2 + $0x1d8] sm:$0xff]
  %v1867 = vld [vmem:[%s2 + $0x1e0] sm:$0xff]
  %v1868 = vld [vmem:[%s2 + $0x1e8] sm:$0xff]
  %v1869 = vld [vmem:[%s2 + $0x1f0] sm:$0xff]
  %v1870 = vld [vmem:[%s2 + $0x1f8] sm:$0xff]
  %1871 = vmatpush.msra.mxu0 %v1867
  %1872 = vmatpush.msra.mxu0 %v1863
  %1873 = vmatpush.msra.mxu0 %v1859
  %1874 = vmatpush.msra.mxu0 %v1855
  %1875 = vmatpush.msra.mxu0 %v1851
  %1876 = vmatpush.msra.mxu0 %v1847
  %1877 = vmatpush.msra.mxu0 %v1843
  %1878 = vmatpush.msra.mxu0 %v1839
  %1879 = vmatpush.msra.mxu0 %v1835
  %1880 = vmatpush.msra.mxu0 %v1831
  %1881 = vmatpush.msra.mxu0 %v1827
  %1882 = vmatpush.msra.mxu0 %v1823
  %1883 = vmatpush.msra.mxu0 %v1819
  %1884 = vmatpush.msra.mxu0 %v1815
  %1885 = vmatpush.msra.mxu0 %v1811
  %1886 = vmatpush.msra.mxu0 %v1807
  %1887 = vmatmul.f32.gmra.mxu0 %v1799
  %v1888 = vpop.f32.mrf.mxu0
  %v1889 = vadd.f32 0.0, %v1888
  %1890 = vdwg.mxu0
  %1891 = vmatpush.msra.mxu0 %v1868
  %1892 = vmatpush.msra.mxu0 %v1864
  %1893 = vmatpush.msra.mxu0 %v1860
  %1894 = vmatpush.msra.mxu0 %v1856
  %1895 = vmatpush.msra.mxu0 %v1852
  %1896 = vmatpush.msra.mxu0 %v1848
  %1897 = vmatpush.msra.mxu0 %v1844
  %1898 = vmatpush.msra.mxu0 %v1840
  %1899 = vmatpush.msra.mxu0 %v1836
  %1900 = vmatpush.msra.mxu0 %v1832
  %1901 = vmatpush.msra.mxu0 %v1828
  %1902 = vmatpush.msra.mxu0 %v1824
  %1903 = vmatpush.msra.mxu0 %v1820
  %1904 = vmatpush.msra.mxu0 %v1816
  %1905 = vmatpush.msra.mxu0 %v1812
  %1906 = vmatpush.msra.mxu0 %v1808
  %1907 = vmatmul.f32.gmra.mxu0 %v1799
  %v1908 = vpop.f32.mrf.mxu0
  %v1909 = vadd.f32 0.0, %v1908
  %1910 = vdwg.mxu0
  %1911 = vmatpush.msra.mxu0 %v1869
  %1912 = vmatpush.msra.mxu0 %v1865
  %1913 = vmatpush.msra.mxu0 %v1861
  %1914 = vmatpush.msra.mxu0 %v1857
  %1915 = vmatpush.msra.mxu0 %v1853
  %1916 = vmatpush.msra.mxu0 %v1849
  %1917 = vmatpush.msra.mxu0 %v1845
  %1918 = vmatpush.msra.mxu0 %v1841
  %1919 = vmatpush.msra.mxu0 %v1837
  %1920 = vmatpush.msra.mxu0 %v1833
  %1921 = vmatpush.msra.mxu0 %v1829
  %1922 = vmatpush.msra.mxu0 %v1825
  %1923 = vmatpush.msra.mxu0 %v1821
  %1924 = vmatpush.msra.mxu0 %v1817
  %1925 = vmatpush.msra.mxu0 %v1813
  %1926 = vmatpush.msra.mxu0 %v1809
  %1927 = vmatmul.f32.gmra.mxu0 %v1799
  %v1928 = vpop.f32.mrf.mxu0
  %v1929 = vadd.f32 0.0, %v1928
  %1930 = vdwg.mxu0
  %1931 = vmatpush.msra.mxu0 %v1870
  %1932 = vmatpush.msra.mxu0 %v1866
  %1933 = vmatpush.msra.mxu0 %v1862
  %1934 = vmatpush.msra.mxu0 %v1858
  %1935 = vmatpush.msra.mxu0 %v1854
  %1936 = vmatpush.msra.mxu0 %v1850
  %1937 = vmatpush.msra.mxu0 %v1846
  %1938 = vmatpush.msra.mxu0 %v1842
  %1939 = vmatpush.msra.mxu0 %v1838
  %1940 = vmatpush.msra.mxu0 %v1834
  %1941 = vmatpush.msra.mxu0 %v1830
  %1942 = vmatpush.msra.mxu0 %v1826
  %1943 = vmatpush.msra.mxu0 %v1822
  %1944 = vmatpush.msra.mxu0 %v1818
  %1945 = vmatpush.msra.mxu0 %v1814
  %1946 = vmatpush.msra.mxu0 %v1810
  %1947 = vmatmul.f32.gmra.mxu0 %v1799
  %v1948 = vpop.f32.mrf.mxu0
  %v1949 = vadd.f32 0.0, %v1948
  %1950 = vdwg.mxu0
  %v1951 = vadd.f32 %v1803, %v1889
  %v1952 = vadd.f32 %v1804, %v1909
  %v1953 = vadd.f32 %v1805, %v1929
  %v1954 = vadd.f32 %v1806, %v1949
  %v1955 = vxor.u32 %v1951, 2147483648
  %v1956 = vmul.f32 %v1955, 1.442695
  %v1957 = vpow.pop %v1956
  %v1958 = vadd.f32 %v1957, 1.0
  %v1959 = vrcp.pop %v1958
  %v1960 = vmul.f32 %v1958, %v1959
  %v1961 = vsub.f32 1.0, %v1960
  %v1962 = vmul.f32 %v1959, %v1961
  %v1963 = vadd.f32 %v1959, %v1962
  %vm1964 = vweird.f32 %v1958
  %vm1965 = vweird.f32 %v1959
  %vm1966 = vmor %vm1964, %vm1965
  %v1967 = vsel %vm1966, %v1959, %v1963
  %v1968 = vand.u32 2147483647, %v1958
  %vm1969 = vcmp.eq.f32.partialorder %v1968, 8.507059e+37
  %v1970 = vand.u32 %v1958, 2147483648
  %v1971 = vor.u32 1.1754944e-38, %v1970
  %v1972 = vsel %vm1969, %v1971, %v1967
  %v1973 = vmul.f32 1.0, %v1972
  %v1974 = vxor.u32 %v1952, 2147483648
  %v1975 = vmul.f32 %v1974, 1.442695
  %v1976 = vpow.pop %v1975
  %v1977 = vadd.f32 %v1976, 1.0
  %v1978 = vrcp.pop %v1977
  %v1979 = vmul.f32 %v1977, %v1978
  %v1980 = vsub.f32 1.0, %v1979
  %v1981 = vmul.f32 %v1978, %v1980
  %v1982 = vadd.f32 %v1978, %v1981
  %vm1983 = vweird.f32 %v1977
  %vm1984 = vweird.f32 %v1978
  %vm1985 = vmor %vm1983, %vm1984
  %v1986 = vsel %vm1985, %v1978, %v1982
  %v1987 = vand.u32 2147483647, %v1977
  %vm1988 = vcmp.eq.f32.partialorder %v1987, 8.507059e+37
  %v1989 = vand.u32 %v1977, 2147483648
  %v1990 = vor.u32 1.1754944e-38, %v1989
  %v1991 = vsel %vm1988, %v1990, %v1986
  %v1992 = vmul.f32 1.0, %v1991
  %v1993 = vtanh.pop %v1953
  %v1994 = vxor.u32 %v1954, 2147483648
  %v1995 = vmul.f32 %v1994, 1.442695
  %v1996 = vpow.pop %v1995
  %v1997 = vadd.f32 %v1996, 1.0
  %v1998 = vrcp.pop %v1997
  %v1999 = vmul.f32 %v1997, %v1998
  %v2000 = vsub.f32 1.0, %v1999
  %v2001 = vmul.f32 %v1998, %v2000
  %v2002 = vadd.f32 %v1998, %v2001
  %vm2003 = vweird.f32 %v1997
  %vm2004 = vweird.f32 %v1998
  %vm2005 = vmor %vm2003, %vm2004
  %v2006 = vsel %vm2005, %v1998, %v2002
  %v2007 = vand.u32 2147483647, %v1997
  %vm2008 = vcmp.eq.f32.partialorder %v2007, 8.507059e+37
  %v2009 = vand.u32 %v1997, 2147483648
  %v2010 = vor.u32 1.1754944e-38, %v2009
  %v2011 = vsel %vm2008, %v2010, %v2006
  %v2012 = vmul.f32 1.0, %v2011
  %v2013 = vmul.f32 %v1992, %v1797
  %v2014 = vmul.f32 %v1973, %v1993
  %v2015 = vadd.f32 %v2013, %v2014
  %v2016 = vtanh.pop %v2015
  %v2017 = vmul.f32 %v2012, %v2016
  %s2018 = scalar_lea.vmem [#allocation3], 56
  %2019 = vst [vmem:[%s2018] sm:$0xff] %v2017
  %v2020 = vld [vmem:[#allocation3] sm:$0xff]
  %v2021 = vld [vmem:[#allocation3 + $0x8] sm:$0xff]
  %v2022 = vld [vmem:[#allocation3 + $0x10] sm:$0xff]
  %v2023 = vld [vmem:[#allocation3 + $0x18] sm:$0xff]
  %v2024 = vld [vmem:[#allocation3 + $0x20] sm:$0xff]
  %v2025 = vld [vmem:[#allocation3 + $0x28] sm:$0xff]
  %v2026 = vld [vmem:[#allocation3 + $0x30] sm:$0xff]
  %v2027 = vld [vmem:[#allocation3 + $0x38] sm:$0xff]
  %v2028 = vld [vmem:[%s4] sm:$0xff]
  %v2029 = vld [vmem:[%s4 + $0x8] sm:$0xff]
  %v2030 = vld [vmem:[%s4 + $0x10] sm:$0xff]
  %v2031 = vld [vmem:[%s4 + $0x18] sm:$0xff]
  %v2032 = vld [vmem:[%s4 + $0x20] sm:$0xff]
  %v2033 = vld [vmem:[%s4 + $0x28] sm:$0xff]
  %v2034 = vld [vmem:[%s4 + $0x30] sm:$0xff]
  %v2035 = vld [vmem:[%s4 + $0x38] sm:$0xff]
  %v2036 = vld [vmem:[%s4 + $0x40] sm:$0xff]
  %v2037 = vld [vmem:[%s4 + $0x48] sm:$0xff]
  %v2038 = vld [vmem:[%s4 + $0x50] sm:$0xff]
  %v2039 = vld [vmem:[%s4 + $0x58] sm:$0xff]
  %v2040 = vld [vmem:[%s4 + $0x60] sm:$0xff]
  %v2041 = vld [vmem:[%s4 + $0x68] sm:$0xff]
  %v2042 = vld [vmem:[%s4 + $0x70] sm:$0xff]
  %v2043 = vld [vmem:[%s4 + $0x78] sm:$0xff]
  %v2044 = vld [vmem:[%s5] sm:$0x1]
  %v2046 = vperm.slane %v2044, 0
  %2048 = vmatpush.msra.mxu0 %v2043
  %2049 = vmatpush.msra.mxu0 %v2042
  %2050 = vmatpush.msra.mxu0 %v2041
  %2051 = vmatpush.msra.mxu0 %v2040
  %2052 = vmatpush.msra.mxu0 %v2039
  %2053 = vmatpush.msra.mxu0 %v2038
  %2054 = vmatpush.msra.mxu0 %v2037
  %2055 = vmatpush.msra.mxu0 %v2036
  %2056 = vmatpush.msra.mxu0 %v2035
  %2057 = vmatpush.msra.mxu0 %v2034
  %2058 = vmatpush.msra.mxu0 %v2033
  %2059 = vmatpush.msra.mxu0 %v2032
  %2060 = vmatpush.msra.mxu0 %v2031
  %2061 = vmatpush.msra.mxu0 %v2030
  %2062 = vmatpush.msra.mxu0 %v2029
  %2063 = vmatpush.msra.mxu0 %v2028
  %2064 = vmatmul.f32.gmra.mxu0 %v2020
  %v2065 = vpop.f32.mrf.mxu0
  %v2066 = vadd.f32 %v2046, %v2065
  %2067 = vmatmul.f32.gmra.mxu0 %v2021
  %v2068 = vpop.f32.mrf.mxu0
  %v2069 = vadd.f32 %v2046, %v2068
  %2070 = vmatmul.f32.gmra.mxu0 %v2022
  %v2071 = vpop.f32.mrf.mxu0
  %v2072 = vadd.f32 %v2046, %v2071
  %2073 = vmatmul.f32.gmra.mxu0 %v2023
  %v2074 = vpop.f32.mrf.mxu0
  %v2075 = vadd.f32 %v2046, %v2074
  %2076 = vmatmul.f32.gmra.mxu0 %v2024
  %v2077 = vpop.f32.mrf.mxu0
  %v2078 = vadd.f32 %v2046, %v2077
  %2079 = vmatmul.f32.gmra.mxu0 %v2025
  %v2080 = vpop.f32.mrf.mxu0
  %v2081 = vadd.f32 %v2046, %v2080
  %2082 = vmatmul.f32.gmra.mxu0 %v2026
  %v2083 = vpop.f32.mrf.mxu0
  %v2084 = vadd.f32 %v2046, %v2083
  %2085 = vmatmul.f32.gmra.mxu0 %v2027
  %v2086 = vpop.f32.mrf.mxu0
  %v2087 = vadd.f32 %v2046, %v2086
  %2088 = vdwg.mxu0
  %2089 = vst [vmem:[%s6] sm:$0xff] %v2066
  %2090 = vst [vmem:[%s6 + $0x8] sm:$0xff] %v2069
  %2091 = vst [vmem:[%s6 + $0x10] sm:$0xff] %v2072
  %2092 = vst [vmem:[%s6 + $0x18] sm:$0xff] %v2075
  %2093 = vst [vmem:[%s6 + $0x20] sm:$0xff] %v2078
  %2094 = vst [vmem:[%s6 + $0x28] sm:$0xff] %v2081
  %2095 = vst [vmem:[%s6 + $0x30] sm:$0xff] %v2084
  %2096 = vst [vmem:[%s6 + $0x38] sm:$0xff] %v2087
  // Predicated region
  $region26: #{decoder_rnn_forward.1} parent=0 // pred_check
    _
  $region27: #{decoder_rnn_forward.1} parent=0 // pred_check_branch
    %2098 = sbr.rel (0) target = $region29
  $region28: #{decoder_rnn_forward.1} parent=0 // pred_region
    _
  $region29: #{decoder_rnn_forward.1} parent=0 // pred_fallthru
    _
  // Predicated region
  $region30: #{decoder_rnn_forward.1} parent=0 // pred_check
    _
  $region31: #{decoder_rnn_forward.1} parent=0 // pred_check_branch
    %2100 = sbr.rel (0) target = $region33
  $region32: #{decoder_rnn_forward.1} parent=0 // pred_region
    _
  $region33: #{decoder_rnn_forward.1} parent=0 // pred_fallthru
    _

</llo_original>
